<compile_context>
chip_gen: v7x
topology: tpu7x:2x2x1
jax: 0.10.0
libtpu: 0.0.40
codegen_flags: <defaults>
</compile_context>

<pallas_src>
import functools

import jax
import jax.numpy as jnp
from jax.experimental import pallas as pl
from jax.experimental.pallas import tpu as pltpu

KERNEL_SIZES = (2, 3, 4)
NUM_FILTERS = 10                            # Conv1d out_channels in the module
NUM_TAPS = max(KERNEL_SIZES)                # 4
TAP_GROUP = 32                              # lanes per tap group (30 used + 2 pad)
FEAT = len(KERNEL_SIZES) * NUM_FILTERS      # 30 concatenated pooled features
LANES = 128


def _round_up(x, m):
    return (x + m - 1) // m * m


def textcnn_kernel(ids_ref, embw_ref, tmask_ref, bcat_ref, wd_ref, bd_ref,
                   out_ref, *, use_sigmoid):
    """One batch tile (tb rows) per grid step.

    ids_ref  : [tb, SP]   i32   token ids (time-padded with padding idx 0)
    embw_ref : [Vp, 128]  bf16  fused (embedding @ conv-weight) table; the 128
                                lanes hold 4 tap-groups of 32 lanes, 10 lanes
                                per conv branch per tap (zeros elsewhere)
    tmask_ref: [SP, 128]  f32   additive time mask (0 valid / -1e30 invalid)
    bcat_ref : [1, 128]   f32   conv biases [b1|b2|b3|zeros]
    wd_ref   : [128, 128] f32   dense weight (rows >= 30 and cols >= out_dim 0)
    bd_ref   : [1, 128]   f32   dense bias; cols >= out_dim are -1e30 so the
                                softmax/sigmoid lanes beyond num_class vanish
    out_ref  : [tb, 128]  f32   activated output (lane-dense; sliced by caller)
    """
    tb, sp = ids_ref.shape
    vocab_pad = embw_ref.shape[0]
    n_rows = tb * sp

    # ---- one-hot(ids) @ (embedding @ W_cat): gather + all conv taps, 1 pass --
    ids = ids_ref[...]                                               # [tb, SP]
    viota = jax.lax.broadcasted_iota(jnp.int32, (tb, sp, vocab_pad), 2)
    one_hot = (viota == ids[:, :, None]).astype(jnp.bfloat16)
    y = jnp.dot(one_hot.reshape(n_rows, vocab_pad), embw_ref[...],
                preferred_element_type=jnp.float32)          # [tb*sp, 128] f32

    # ---- tap reduction on the XLU: conv[b,t,c] = sum_j y[b, t+j, 32*j + c] --
    # Realized as full-width rolls (time shift -j == sublane roll, lane shift
    # -32*j == lane roll) and adds; only lanes [0, 30) of the sum are
    # meaningful, the junk lanes are killed downstream by the masks / zero
    # weight rows.  Time wrap-around only hits masked positions.
    acc = y
    for j in range(1, NUM_TAPS):
        sh = pltpu.roll(y, shift=n_rows - j, axis=0)              # time  -j
        sh = pltpu.roll(sh, shift=LANES - j * TAP_GROUP, axis=1)  # lanes -32j
        acc = acc + sh

    # ---- masked max-pool over time, conv bias, dense, output activation -----
    conv = acc.reshape(tb, sp, LANES) + tmask_ref[...][None, :, :]
    pooled = jnp.max(conv, axis=1) + bcat_ref[...]                # [tb, 128]

    logits = jnp.dot(pooled, wd_ref[...],
                     preferred_element_type=jnp.float32) + bd_ref[...]
    if use_sigmoid:
        out = jax.nn.sigmoid(logits)      # lanes >= out_dim: sigmoid(-1e30)=0
    else:
        mx = jnp.max(logits, axis=1, keepdims=True)
        e = jnp.exp(logits - mx)          # lanes >= out_dim underflow to 0
        out = e / jnp.sum(e, axis=1, keepdims=True)
    out_ref[...] = out.astype(out_ref.dtype)


def textcnn_forward(token_ids, params, num_class, *, tb=None):
    """Full forward pass (deterministic sample=False path of the module)."""
    B, S = token_ids.shape
    emb = params["embedding"]
    V1, E = emb.shape                        # vocab_size + 1, embedding dim
    use_sigmoid = num_class in (None, 2)
    out_dim = 1 if use_sigmoid else num_class

    # ---- batch tile: as large as possible (<=256), multiple of 8, and >= 2
    # grid steps when the batch allows it (v7x has 2 TensorCores).
    if tb is None:
        half = B if B <= 8 else (B + 1) // 2
        tb = max(8, min(256, _round_up(half, 8)))
    tb = _round_up(tb, 8)
    b_pad = _round_up(B, tb)

    seq_pad = _round_up(S + NUM_TAPS - 1, 8)

    # ---- fused (embedding @ W_cat) table ------------------------------------
    # TODO(synk): the in-kernel one-hot gather keeps the [vocab_pad,128] bf16
    # table VMEM-resident; for very large vocabularies (roughly >100K rows,
    # less on v7x's 64 MiB VMEM) gather outside the kernel (jnp.take) or use an
    # Element-gather BlockSpec, single-buffer the resident tables
    # (pipeline_mode=pl.Buffered(1)) and raise vmem_limit_bytes.
    vocab_pad = _round_up(V1, LANES)
    wcat = jnp.zeros((E, LANES), jnp.float32)
    for br, (w, k) in enumerate(((params["w1"], KERNEL_SIZES[0]),
                                 (params["w2"], KERNEL_SIZES[1]),
                                 (params["w3"], KERNEL_SIZES[2]))):
        lo = br * NUM_FILTERS
        for j in range(k):
            wcat = wcat.at[:, j * TAP_GROUP + lo:
                              j * TAP_GROUP + lo + NUM_FILTERS].set(w[j])
    emb_p = jnp.zeros((vocab_pad, E), jnp.float32).at[:V1].set(
        emb.astype(jnp.float32))
    embw = jnp.dot(emb_p, wcat,
                   precision=jax.lax.Precision.HIGHEST).astype(jnp.bfloat16)

    # ---- additive time mask (grid-invariant, hoisted out of the kernel) -----
    t_idx = jnp.arange(seq_pad, dtype=jnp.int32)[:, None]            # [SP, 1]
    lane = jnp.arange(LANES, dtype=jnp.int32)[None, :]               # [1, 128]
    klen = (2 + (lane >= NUM_FILTERS).astype(jnp.int32)
              + (lane >= 2 * NUM_FILTERS).astype(jnp.int32))
    valid = (t_idx <= S - klen) & (lane < FEAT)
    tmask = jnp.where(valid, 0.0, -1e30).astype(jnp.float32)         # [SP,128]

    bcat = jnp.zeros((1, LANES), jnp.float32)
    bcat = bcat.at[:, 0:NUM_FILTERS].set(params["b1"])
    bcat = bcat.at[:, NUM_FILTERS:2 * NUM_FILTERS].set(params["b2"])
    bcat = bcat.at[:, 2 * NUM_FILTERS:3 * NUM_FILTERS].set(params["b3"])

    # Dense stays f32 (tiny); zero rows kill the junk pooled lanes, -1e30 bias
    # lanes kill the softmax/sigmoid columns beyond num_class.
    wd = jnp.zeros((LANES, LANES), jnp.float32)
    wd = wd.at[:FEAT, :out_dim].set(params["wd"])
    bd = jnp.full((1, LANES), -1e30, jnp.float32)
    bd = bd.at[:, :out_dim].set(params["bd"])

    # ---- pad tokens (padding idx 0 -> zero embedding row) -------------------
    ids = jnp.zeros((b_pad, seq_pad), jnp.int32).at[:B, :S].set(token_ids)

    kernel = functools.partial(textcnn_kernel, use_sigmoid=use_sigmoid)

    def resident(shape):
        return pl.BlockSpec(shape, lambda b, _z=(0,) * len(shape): _z)

    out = pl.pallas_call(
        kernel,
        out_shape=jax.ShapeDtypeStruct((b_pad, LANES), jnp.float32),
        grid_spec=pltpu.PrefetchScalarGridSpec(
            num_scalar_prefetch=0,
            grid=(b_pad // tb,),
            in_specs=[
                pl.BlockSpec((tb, seq_pad), lambda b: (b, 0)),   # token ids
                resident((vocab_pad, LANES)),                    # emb @ W_cat
                resident((seq_pad, LANES)),                      # time mask
                resident((1, LANES)),                            # conv bias
                resident((LANES, LANES)),                        # dense W
                resident((1, LANES)),                            # dense bias
            ],
            out_specs=pl.BlockSpec((tb, LANES), lambda b: (b, 0)),
        ),
        compiler_params=pltpu.CompilerParams(
            dimension_semantics=("parallel",)),
    )(ids, embw, tmask, bcat, wd, bd)
    return out[:B, :out_dim]                 # [B, C]


def reference_forward(token_ids, params, num_class):
    """Pure-JAX f32 reference mirroring the PyTorch forward (sample=False)."""
    xe = jnp.take(params["embedding"], token_ids, axis=0)        # [B, S, E]
    pooled = []
    for w, b, k in ((params["w1"], params["b1"], 2),
                    (params["w2"], params["b2"], 3),
                    (params["w3"], params["b3"], 4)):
        L = xe.shape[1] - k + 1
        h = sum(jnp.einsum('bse,eo->bso', xe[:, j:j + L, :], w[j])
                for j in range(k)) + b                           # [B, L, 10]
        pooled.append(jnp.max(h, axis=1))                        # [B, 10]
    feat = jnp.concatenate(pooled, axis=1)                       # [B, 30]
    logits = feat @ params["wd"] + params["bd"][0]
    if num_class in (None, 2):
        return jax.nn.sigmoid(logits)
    return jax.nn.softmax(logits, axis=1)


def make_params(key, vocab_size, embedding_dim, num_class):
    ks = jax.random.split(key, 9)
    out_dim = 1 if num_class in (None, 2) else num_class
    emb = jax.random.normal(ks[0], (vocab_size + 1, embedding_dim), jnp.float32)
    emb = emb.at[0].set(0.0)                 # padding_idx=0
    params = {"embedding": emb}
    for i, k in enumerate(KERNEL_SIZES, start=1):
        params[f"w{i}"] = 0.1 * jax.random.normal(
            ks[2 * i - 1], (k, embedding_dim, NUM_FILTERS), jnp.float32)
        params[f"b{i}"] = 0.1 * jax.random.normal(
            ks[2 * i], (1, NUM_FILTERS), jnp.float32)
    # BayesLinear deterministic params: W_mu ~ N(0, 0.1), stored transposed.
    params["wd"] = 0.1 * jax.random.normal(ks[7], (FEAT, out_dim), jnp.float32)
    params["bd"] = 0.1 * jax.random.normal(ks[8], (1, out_dim), jnp.float32)
    # TODO(synk): Bayesian sampling path (MultivariateNormal eps, bayes_forward,
    # bayes_infer) is not implemented; forward() default uses W_mu only.
    return params


if __name__ == "__main__":
    VOCAB_SIZE = 50
    EMBED_DIM = 128     # module default
    BATCH, SEQ = 16, 16

    key = jax.random.PRNGKey(0)
    k_tok, k_par1, k_par2 = jax.random.split(key, 3)
    token_ids = jax.random.randint(k_tok, (BATCH, SEQ), 0, VOCAB_SIZE + 1,
                                   dtype=jnp.int32)

    # --- multi-class (softmax) branch ---
    params4 = make_params(k_par1, VOCAB_SIZE, EMBED_DIM, 4)
    out4 = jax.block_until_ready(textcnn_forward(token_ids, params4, 4))
    ref4 = reference_forward(token_ids, params4, 4)
    assert out4.shape == (BATCH, 4)
    # bf16 folded embedding/conv table vs. f32 reference -> loosened tolerance.
    assert jnp.allclose(out4, ref4, atol=2e-2, rtol=0.0), (
        float(jnp.max(jnp.abs(out4 - ref4))))

    # --- binary (sigmoid) branch ---
    params2 = make_params(k_par2, VOCAB_SIZE, EMBED_DIM, 2)
    out2 = jax.block_until_ready(textcnn_forward(token_ids, params2, 2))
    ref2 = reference_forward(token_ids, params2, 2)
    assert out2.shape == (BATCH, 1)
    assert jnp.allclose(out2, ref2, atol=2e-2, rtol=0.0), (
        float(jnp.max(jnp.abs(out2 - ref2))))

    print("KERNEL_OK")
</pallas_src>

<mosaic_0001>
module attributes {stable_mosaic.version = 11 : i64} {
  func.func @textcnn_kernel(%arg0: i32, %arg1: memref<8x24xi32, #tpu.memory_space<vmem>>, %arg2: memref<128x128xbf16, #tpu.memory_space<vmem>>, %arg3: memref<24x128xf32, #tpu.memory_space<vmem>>, %arg4: memref<1x128xf32, #tpu.memory_space<vmem>>, %arg5: memref<128x128xf32, #tpu.memory_space<vmem>>, %arg6: memref<1x128xf32, #tpu.memory_space<vmem>>, %arg7: memref<8x128xf32, #tpu.memory_space<vmem>>) attributes {dimension_semantics = [#tpu.dimension_semantics<parallel>], iteration_bounds = array<i64: 2>, scalar_prefetch = 0 : i64, scratch_operands = 0 : i64, tpu.core_type = #tpu.core_type<tc>, window_params = [{transform_indices = @transform_0, window_bounds = array<i64: 8, 24>}, {pipeline_mode = #tpu.pipeline_mode<synchronous>, transform_indices = @transform_1, window_bounds = array<i64: 128, 128>}, {pipeline_mode = #tpu.pipeline_mode<synchronous>, transform_indices = @transform_2, window_bounds = array<i64: 24, 128>}, {pipeline_mode = #tpu.pipeline_mode<synchronous>, transform_indices = @transform_3, window_bounds = array<i64: 1, 128>}, {pipeline_mode = #tpu.pipeline_mode<synchronous>, transform_indices = @transform_4, window_bounds = array<i64: 128, 128>}, {pipeline_mode = #tpu.pipeline_mode<synchronous>, transform_indices = @transform_5, window_bounds = array<i64: 1, 128>}, {transform_indices = @transform_6, window_bounds = array<i64: 8, 128>}]} {
    %c0 = arith.constant 0 : index
    %c0_0 = arith.constant 0 : index
    %0 = vector.load %arg1[%c0, %c0_0] : memref<8x24xi32, #tpu.memory_space<vmem>>, vector<8x24xi32>
    %1 = tpu.iota {dimensions = array<i32: 2>} : vector<8x24x128xi32>
    %2 = vector.shape_cast %0 : vector<8x24xi32> to vector<8x24x1xi32>
    %3 = vector.broadcast %2 : vector<8x24x1xi32> to vector<8x24x128xi32>
    %4 = arith.cmpi eq, %1, %3 : vector<8x24x128xi32>
    %5 = arith.extui %4 : vector<8x24x128xi1> to vector<8x24x128xi32>
    %6 = arith.sitofp %5 : vector<8x24x128xi32> to vector<8x24x128xf32>
    %7 = arith.truncf %6 : vector<8x24x128xf32> to vector<8x24x128xbf16>
    %8 = vector.shape_cast %7 : vector<8x24x128xbf16> to vector<192x128xbf16>
    %c0_1 = arith.constant 0 : index
    %c0_2 = arith.constant 0 : index
    %9 = vector.load %arg2[%c0_1, %c0_2] : memref<128x128xbf16, #tpu.memory_space<vmem>>, vector<128x128xbf16>
    %cst = arith.constant dense<0.000000e+00> : vector<192x128xf32>
    %10 = tpu.matmul %8, %9, %cst {dimension_numbers = #tpu.dot_dimension_numbers<[1], [0], [0], [1], [0, 0, 1, 1], [], []>} : vector<192x128xbf16>, vector<128x128xbf16>, vector<192x128xf32> -> vector<192x128xf32>
    %c191_i32 = arith.constant 191 : i32
    %11 = tpu.dynamic_rotate %10 by %c191_i32 dim 0 : vector<192x128xf32>, i32 -> vector<192x128xf32>
    %c96_i32 = arith.constant 96 : i32
    %12 = tpu.dynamic_rotate %11 by %c96_i32 dim 1 : vector<192x128xf32>, i32 -> vector<192x128xf32>
    %13 = arith.addf %10, %12 : vector<192x128xf32>
    %c190_i32 = arith.constant 190 : i32
    %14 = tpu.dynamic_rotate %10 by %c190_i32 dim 0 : vector<192x128xf32>, i32 -> vector<192x128xf32>
    %c64_i32 = arith.constant 64 : i32
    %15 = tpu.dynamic_rotate %14 by %c64_i32 dim 1 : vector<192x128xf32>, i32 -> vector<192x128xf32>
    %16 = arith.addf %13, %15 : vector<192x128xf32>
    %c189_i32 = arith.constant 189 : i32
    %17 = tpu.dynamic_rotate %10 by %c189_i32 dim 0 : vector<192x128xf32>, i32 -> vector<192x128xf32>
    %c32_i32 = arith.constant 32 : i32
    %18 = tpu.dynamic_rotate %17 by %c32_i32 dim 1 : vector<192x128xf32>, i32 -> vector<192x128xf32>
    %19 = arith.addf %16, %18 : vector<192x128xf32>
    %20 = vector.shape_cast %19 : vector<192x128xf32> to vector<8x24x128xf32>
    %c0_3 = arith.constant 0 : index
    %c0_4 = arith.constant 0 : index
    %21 = vector.load %arg3[%c0_3, %c0_4] : memref<24x128xf32, #tpu.memory_space<vmem>>, vector<24x128xf32>
    %22 = vector.shape_cast %21 : vector<24x128xf32> to vector<1x24x128xf32>
    %23 = vector.broadcast %22 : vector<1x24x128xf32> to vector<8x24x128xf32>
    %24 = arith.addf %20, %23 : vector<8x24x128xf32>
    %cst_5 = arith.constant dense<0xFF800000> : vector<8x128xf32>
    %25 = vector.multi_reduction <maximumf>, %24, %cst_5 [1] : vector<8x24x128xf32> to vector<8x128xf32>
    %c0_6 = arith.constant 0 : index
    %c0_7 = arith.constant 0 : index
    %26 = vector.load %arg4[%c0_6, %c0_7] : memref<1x128xf32, #tpu.memory_space<vmem>>, vector<1x128xf32>
    %27 = vector.broadcast %26 : vector<1x128xf32> to vector<8x128xf32>
    %28 = arith.addf %25, %27 : vector<8x128xf32>
    %c0_8 = arith.constant 0 : index
    %c0_9 = arith.constant 0 : index
    %29 = vector.load %arg5[%c0_8, %c0_9] : memref<128x128xf32, #tpu.memory_space<vmem>>, vector<128x128xf32>
    %cst_10 = arith.constant dense<0.000000e+00> : vector<8x128xf32>
    %30 = tpu.matmul %28, %29, %cst_10 {dimension_numbers = #tpu.dot_dimension_numbers<[1], [0], [0], [1], [0, 0, 1, 1], [], []>} : vector<8x128xf32>, vector<128x128xf32>, vector<8x128xf32> -> vector<8x128xf32>
    %c0_11 = arith.constant 0 : index
    %c0_12 = arith.constant 0 : index
    %31 = vector.load %arg6[%c0_11, %c0_12] : memref<1x128xf32, #tpu.memory_space<vmem>>, vector<1x128xf32>
    %32 = vector.broadcast %31 : vector<1x128xf32> to vector<8x128xf32>
    %33 = arith.addf %30, %32 : vector<8x128xf32>
    %cst_13 = arith.constant dense<0xFF800000> : vector<8xf32>
    %34 = vector.multi_reduction <maximumf>, %33, %cst_13 [1] : vector<8x128xf32> to vector<8xf32>
    %35 = vector.shape_cast %34 : vector<8xf32> to vector<8x1xf32>
    %36 = vector.broadcast %35 : vector<8x1xf32> to vector<8x128xf32>
    %37 = arith.subf %33, %36 : vector<8x128xf32>
    %38 = math.exp %37 : vector<8x128xf32>
    %cst_14 = arith.constant dense<0.000000e+00> : vector<8xf32>
    %39 = vector.multi_reduction <add>, %38, %cst_14 [1] : vector<8x128xf32> to vector<8xf32>
    %40 = vector.shape_cast %39 : vector<8xf32> to vector<8x1xf32>
    %41 = vector.broadcast %40 : vector<8x1xf32> to vector<8x128xf32>
    %42 = arith.divf %38, %41 : vector<8x128xf32>
    %c0_15 = arith.constant 0 : index
    %c0_16 = arith.constant 0 : index
    %43 = vector.load %arg7[%c0_15, %c0_16] : memref<8x128xf32, #tpu.memory_space<vmem>>, vector<8x128xf32>
    tpu.vector_store %arg7[%c0_15, %c0_16], %42 {strides = array<i32>} : memref<8x128xf32, #tpu.memory_space<vmem>>, vector<8x128xf32>,
    return
  }
  func.func @transform_0(%arg0: i32) -> (i32, i32) {
    %c0_i32 = arith.constant 0 : i32
    %c0_i32_0 = arith.constant 0 : i32
    return %arg0, %c0_i32 : i32, i32
  }
  func.func @transform_1(%arg0: i32) -> (i32, i32) {
    %c0_i32 = arith.constant 0 : i32
    %c0_i32_0 = arith.constant 0 : i32
    %c0_i32_1 = arith.constant 0 : i32
    return %c0_i32, %c0_i32_0 : i32, i32
  }
  func.func @transform_2(%arg0: i32) -> (i32, i32) {
    %c0_i32 = arith.constant 0 : i32
    %c0_i32_0 = arith.constant 0 : i32
    %c0_i32_1 = arith.constant 0 : i32
    return %c0_i32, %c0_i32_0 : i32, i32
  }
  func.func @transform_3(%arg0: i32) -> (i32, i32) {
    %c0_i32 = arith.constant 0 : i32
    %c0_i32_0 = arith.constant 0 : i32
    %c0_i32_1 = arith.constant 0 : i32
    return %c0_i32, %c0_i32_0 : i32, i32
  }
  func.func @transform_4(%arg0: i32) -> (i32, i32) {
    %c0_i32 = arith.constant 0 : i32
    %c0_i32_0 = arith.constant 0 : i32
    %c0_i32_1 = arith.constant 0 : i32
    return %c0_i32, %c0_i32_0 : i32, i32
  }
  func.func @transform_5(%arg0: i32) -> (i32, i32) {
    %c0_i32 = arith.constant 0 : i32
    %c0_i32_0 = arith.constant 0 : i32
    %c0_i32_1 = arith.constant 0 : i32
    return %c0_i32, %c0_i32_0 : i32, i32
  }
  func.func @transform_6(%arg0: i32) -> (i32, i32) {
    %c0_i32 = arith.constant 0 : i32
    %c0_i32_0 = arith.constant 0 : i32
    return %arg0, %c0_i32 : i32, i32
  }
}

</mosaic_0001>

<llo_original>
// kernel: tpu_custom_call.1
$region0: #{tpu_custom_call.1}
  #allocation0 [shape = 'u32[]', space=smem, size = 0x4, offset = 0x4, fixed_abs, tag = 'smem constant byte address 0x4 - core index']
  #allocation1 [shape = 'u32[144,128]{1,0:T(1,128)}', space=vmem, size = 0x12000, scoped, tag = 'internal scratch']
  %s0 = inlined_call_operand.hbm [shape: s32[16,24], index: 0, kind: input, shape index: {}]
  %s1 = inlined_call_operand.hbm [shape: bf16[128,128], index: 1, kind: input, shape index: {}]
  %s2 = inlined_call_operand.hbm [shape: f32[24,128], index: 2, kind: input, shape index: {}]
  %s3 = inlined_call_operand.vmem [shape: f32[1,128], index: 3, kind: input, shape index: {}]
  %s4 = inlined_call_operand.hbm [shape: f32[128,128], index: 4, kind: input, shape index: {}]
  %s5 = inlined_call_operand.vmem [shape: f32[1,128], index: 5, kind: input, shape index: {}]
  %s6 = inlined_call_operand.hbm [shape: f32[16,128], index: 6, kind: output, shape index: {}]
  %s7 = sld [smem:[#allocation0]]
  $region73: #{tpu_custom_call.1} parent=0
    _
  %s9 = ssub.s32 1, %s7
  %s10 = scalar_select 0, %s9, %s7
  $region1: #{tpu_custom_call.1} parent=0
    #allocation2 [shape = 'u8[8192]{0}', space=vmem, size = 0x2000, scoped, tag = 'input window, operand 0']
    #allocation3 [shape = 's32[2]{0}', space=sflag, size = 0x8, scoped, tag = 'scoped memory for tpu_custom_call.1']
    #allocation4 [shape = 's32[2]{0}', space=sflag, size = 0x8, scoped, tag = 'scoped memory for tpu_custom_call.1']
    #allocation5 [shape = 'u8[32768]{0}', space=vmem, size = 0x8000, scoped, tag = 'input window, operand 1, single buffered']
    #allocation6 [shape = 's32[1]{0}', space=sflag, size = 0x4, scoped, tag = 'scoped memory for tpu_custom_call.1']
    #allocation7 [shape = 'u8[12288]{0}', space=vmem, size = 0x3000, scoped, tag = 'input window, operand 2, single buffered']
    #allocation8 [shape = 'u8[65536]{0}', space=vmem, size = 0x10000, scoped, tag = 'input window, operand 4, single buffered']
    #allocation9 [shape = 's32[1]{0}', space=sflag, size = 0x4, scoped, tag = 'scoped memory for tpu_custom_call.1']
    #allocation10 [shape = 'u8[8192]{0}', space=vmem, size = 0x2000, scoped, tag = 'output window, operand 0']
    %11 = vsyncpa [#allocation3], 0
    %s12 = scalar_lea.sflag [#allocation3], 1
    %13 = vsyncpa %s12, 0
    %14 = vsyncpa [#allocation6], 0
    %15 = vsyncpa [#allocation9], 0
    %16 = vsyncpa [#allocation4], 0
    %s17 = scalar_lea.sflag [#allocation4], 1
    %18 = vsyncpa %s17, 0
    loop: start=0, step=1, limit=4
    $region2: #{tpu_custom_call.1} parent=1 // loop_pre_header
      _
    $region3: #{tpu_custom_call.1} parent=1 // loop_header
      %s20 = sphi 0, %s24
      %p21 = scmp.ge.s32.totalorder %s20, 4
      %s30 = sphi 0, %s32
      %s33 = sphi 0, %s30
      %s34 = sphi 0, %s33
      %s50 = sphi 0, %s34
      %s54 = sphi 0, %s54
      %s56 = sphi 0, %s54
      %s57 = sphi 0, %s56
      %s71 = sphi 0, %s57
      %s75 = sphi 0, %s75
      %s77 = sphi 0, %s75
      %s78 = sphi 0, %s77
      %s92 = sphi 0, %s78
      %s96 = sphi 0, %s96
      %s98 = sphi 0, %s96
      %s99 = sphi 0, %s98
      %s113 = sphi 0, %s99
      %s117 = sphi 0, %s117
      %s119 = sphi 0, %s117
      %s120 = sphi 0, %s119
      %s134 = sphi 0, %s120
      %s138 = sphi 0, %s138
      %s140 = sphi 0, %s138
      %s141 = sphi 0, %s140
      %s155 = sphi 0, %s141
      %s161 = sphi 0, %s163
      %s164 = sphi 0, %s161
      %s165 = sphi 0, %s164
      %s181 = sphi 0, %s165
    $region4: #{tpu_custom_call.1} parent=1 // loop_header_branch
      %23 = sbr.rel (%p21) target = $region8
    $region5: #{tpu_custom_call.1} parent=1 // loop_body
      %s25 = ssub.s32 %s20, 1
      %s26 = ssub.s32 %s20, 2
      %s27 = sadd.s32 %s20, 1
      %s28 = ssub.s32 %s20, %s27
      %p29 = scmp.eq.s32.totalorder %s28, 0
      %s31 = sadd.s32 %s30, 1
      %s32 = scalar_select %p29, %s30, %s31
      %p35 = pneg %p29
      %p36 = scmp.eq.s32.totalorder %s20, 1
      %p37 = por %p35, %p36
      %p38 = scmp.ne.s32.totalorder %s30, %s33
      %p39 = scmp.eq.s32.totalorder %s20, 0
      %p40 = por %p38, %p39
      %p41 = scmp.ne.s32.totalorder %s30, %s33
      %p42 = scmp.eq.s32.totalorder %s25, 1
      %p43 = por %p41, %p42
      %p44 = scmp.ne.s32.totalorder %s33, %s34
      %p45 = scmp.eq.s32.totalorder %s25, 0
      %p46 = por %p44, %p45
      %p47 = scmp.ne.s32.totalorder %s33, %s34
      %p48 = scmp.eq.s32.totalorder %s26, 1
      %p49 = por %p47, %p48
      %p51 = scmp.ne.s32.totalorder %s34, %s50
      %p52 = scmp.eq.s32.totalorder %s26, 0
      %p53 = por %p51, %p52
      %s55 = sadd.s32 %s54, 1
      %p58 = scmp.eq.s32.totalorder %s20, 1
      %p59 = scmp.ne.s32.totalorder %s54, %s56
      %p60 = scmp.eq.s32.totalorder %s20, 0
      %p61 = por %p59, %p60
      %p62 = scmp.ne.s32.totalorder %s54, %s56
      %p63 = scmp.eq.s32.totalorder %s25, 1
      %p64 = por %p62, %p63
      %p65 = scmp.ne.s32.totalorder %s56, %s57
      %p66 = scmp.eq.s32.totalorder %s25, 0
      %p67 = por %p65, %p66
      %p68 = scmp.ne.s32.totalorder %s56, %s57
      %p69 = scmp.eq.s32.totalorder %s26, 1
      %p70 = por %p68, %p69
      %p72 = scmp.ne.s32.totalorder %s57, %s71
      %p73 = scmp.eq.s32.totalorder %s26, 0
      %p74 = por %p72, %p73
      %s76 = sadd.s32 %s75, 1
      %p79 = scmp.eq.s32.totalorder %s20, 1
      %p80 = scmp.ne.s32.totalorder %s75, %s77
      %p81 = scmp.eq.s32.totalorder %s20, 0
      %p82 = por %p80, %p81
      %p83 = scmp.ne.s32.totalorder %s75, %s77
      %p84 = scmp.eq.s32.totalorder %s25, 1
      %p85 = por %p83, %p84
      %p86 = scmp.ne.s32.totalorder %s77, %s78
      %p87 = scmp.eq.s32.totalorder %s25, 0
      %p88 = por %p86, %p87
      %p89 = scmp.ne.s32.totalorder %s77, %s78
      %p90 = scmp.eq.s32.totalorder %s26, 1
      %p91 = por %p89, %p90
      %p93 = scmp.ne.s32.totalorder %s78, %s92
      %p94 = scmp.eq.s32.totalorder %s26, 0
      %p95 = por %p93, %p94
      %s97 = sadd.s32 %s96, 1
      %p100 = scmp.eq.s32.totalorder %s20, 1
      %p101 = scmp.ne.s32.totalorder %s96, %s98
      %p102 = scmp.eq.s32.totalorder %s20, 0
      %p103 = por %p101, %p102
      %p104 = scmp.ne.s32.totalorder %s96, %s98
      %p105 = scmp.eq.s32.totalorder %s25, 1
      %p106 = por %p104, %p105
      %p107 = scmp.ne.s32.totalorder %s98, %s99
      %p108 = scmp.eq.s32.totalorder %s25, 0
      %p109 = por %p107, %p108
      %p110 = scmp.ne.s32.totalorder %s98, %s99
      %p111 = scmp.eq.s32.totalorder %s26, 1
      %p112 = por %p110, %p111
      %p114 = scmp.ne.s32.totalorder %s99, %s113
      %p115 = scmp.eq.s32.totalorder %s26, 0
      %p116 = por %p114, %p115
      %s118 = sadd.s32 %s117, 1
      %p121 = scmp.eq.s32.totalorder %s20, 1
      %p122 = scmp.ne.s32.totalorder %s117, %s119
      %p123 = scmp.eq.s32.totalorder %s20, 0
      %p124 = por %p122, %p123
      %p125 = scmp.ne.s32.totalorder %s117, %s119
      %p126 = scmp.eq.s32.totalorder %s25, 1
      %p127 = por %p125, %p126
      %p128 = scmp.ne.s32.totalorder %s119, %s120
      %p129 = scmp.eq.s32.totalorder %s25, 0
      %p130 = por %p128, %p129
      %p131 = scmp.ne.s32.totalorder %s119, %s120
      %p132 = scmp.eq.s32.totalorder %s26, 1
      %p133 = por %p131, %p132
      %p135 = scmp.ne.s32.totalorder %s120, %s134
      %p136 = scmp.eq.s32.totalorder %s26, 0
      %p137 = por %p135, %p136
      %s139 = sadd.s32 %s138, 1
      %p142 = scmp.eq.s32.totalorder %s20, 1
      %p143 = scmp.ne.s32.totalorder %s138, %s140
      %p144 = scmp.eq.s32.totalorder %s20, 0
      %p145 = por %p143, %p144
      %p146 = scmp.ne.s32.totalorder %s138, %s140
      %p147 = scmp.eq.s32.totalorder %s25, 1
      %p148 = por %p146, %p147
      %p149 = scmp.ne.s32.totalorder %s140, %s141
      %p150 = scmp.eq.s32.totalorder %s25, 0
      %p151 = por %p149, %p150
      %p152 = scmp.ne.s32.totalorder %s140, %s141
      %p153 = scmp.eq.s32.totalorder %s26, 1
      %p154 = por %p152, %p153
      %p156 = scmp.ne.s32.totalorder %s141, %s155
      %p157 = scmp.eq.s32.totalorder %s26, 0
      %p158 = por %p156, %p157
      %s159 = ssub.s32 %s20, %s27
      %p160 = scmp.eq.s32.totalorder %s159, 0
      %s162 = sadd.s32 %s161, 1
      %s163 = scalar_select %p160, %s161, %s162
      %p166 = pneg %p160
      %p167 = scmp.eq.s32.totalorder %s20, 1
      %p168 = por %p166, %p167
      %p169 = scmp.ne.s32.totalorder %s161, %s164
      %p170 = scmp.eq.s32.totalorder %s20, 0
      %p171 = por %p169, %p170
      %p172 = scmp.ne.s32.totalorder %s161, %s164
      %p173 = scmp.eq.s32.totalorder %s25, 1
      %p174 = por %p172, %p173
      %p175 = scmp.ne.s32.totalorder %s164, %s165
      %p176 = scmp.eq.s32.totalorder %s25, 0
      %p177 = por %p175, %p176
      %p178 = scmp.ne.s32.totalorder %s164, %s165
      %p179 = scmp.eq.s32.totalorder %s26, 1
      %p180 = por %p178, %p179
      %p182 = scmp.ne.s32.totalorder %s165, %s181
      %p183 = scmp.eq.s32.totalorder %s26, 0
      %p184 = por %p182, %p183
      %p185 = scmp.le.s32.totalorder 1, %s20
      %p186 = scmp.lt.s32.totalorder %s20, 3
      %p187 = pnand %p185, %p186
      %p188 = pneg %p187
      // Predicated region
      $region9: #{tpu_custom_call.1} parent=5 // pred_check
        _
      $region10: #{tpu_custom_call.1} parent=5 // pred_check_branch
        %190 = sbr.rel (%p187) target = $region12
      $region11: #{tpu_custom_call.1} parent=5 // pred_region
        %s191 = ssub.s32 %s20, 1
        // Predicated region
        $region13: #{tpu_custom_call.1} parent=11 // pred_check
          %p192 = pneg %p67
        $region14: #{tpu_custom_call.1} parent=11 // pred_check_branch
          %194 = sbr.rel (%p192) target = $region16
        $region15: #{tpu_custom_call.1} parent=11 // pred_region
          %s196 = ssub.s32 1024, 1024
          %197 = vsyncadd [#allocation6], %s196
          %s198 = sshll.u32 [#allocation5], 4
          %s199 = int_to_ptr.vmem [resolvable:$true] %s198
          %204 = dma.hbm_to_vmem [thread:$0]  %s1, 1024, %s199, [#allocation6], 64, 64, 4
        $region16: #{tpu_custom_call.1} parent=11 // pred_fallthru
          _
        // Predicated region
        $region17: #{tpu_custom_call.1} parent=11 // pred_check
          %p205 = pneg %p88
        $region18: #{tpu_custom_call.1} parent=11 // pred_check_branch
          %207 = sbr.rel (%p205) target = $region20
        $region19: #{tpu_custom_call.1} parent=11 // pred_region
          %s209 = ssub.s32 384, 384
          %210 = vsyncadd [#allocation6], %s209
          %s211 = sshll.u32 [#allocation7], 4
          %s212 = int_to_ptr.vmem [resolvable:$true] %s211
          %217 = dma.hbm_to_vmem [thread:$0]  %s2, 384, %s212, [#allocation6], 128, 128, 8
        $region20: #{tpu_custom_call.1} parent=11 // pred_fallthru
          _
        // Predicated region
        $region21: #{tpu_custom_call.1} parent=11 // pred_check
          %p218 = pneg %p109
        $region22: #{tpu_custom_call.1} parent=11 // pred_check_branch
          %220 = sbr.rel (%p218) target = $region24
        $region23: #{tpu_custom_call.1} parent=11 // pred_region
          _
        $region24: #{tpu_custom_call.1} parent=11 // pred_fallthru
          _
        // Predicated region
        $region25: #{tpu_custom_call.1} parent=11 // pred_check
          %p221 = pneg %p130
        $region26: #{tpu_custom_call.1} parent=11 // pred_check_branch
          %223 = sbr.rel (%p221) target = $region28
        $region27: #{tpu_custom_call.1} parent=11 // pred_region
          %s225 = ssub.s32 2048, 2048
          %226 = vsyncadd [#allocation9], %s225
          %s227 = sshll.u32 [#allocation8], 4
          %s228 = int_to_ptr.vmem [resolvable:$true] %s227
          %233 = dma.hbm_to_vmem [thread:$0]  %s4, 2048, %s228, [#allocation9], 128, 128, 8
        $region28: #{tpu_custom_call.1} parent=11 // pred_fallthru
          _
        // Predicated region
        $region29: #{tpu_custom_call.1} parent=11 // pred_check
          %p234 = pneg %p151
        $region30: #{tpu_custom_call.1} parent=11 // pred_check_branch
          %236 = sbr.rel (%p234) target = $region32
        $region31: #{tpu_custom_call.1} parent=11 // pred_region
          _
        $region32: #{tpu_custom_call.1} parent=11 // pred_fallthru
          _
      $region12: #{tpu_custom_call.1} parent=5 // pred_fallthru
        _
      %p237 = scmp.lt.s32.totalorder %s20, 2
      // Predicated region
      $region33: #{tpu_custom_call.1} parent=5 // pred_check
        %p238 = pneg %p237
      $region34: #{tpu_custom_call.1} parent=5 // pred_check_branch
        %240 = sbr.rel (%p238) target = $region36
      $region35: #{tpu_custom_call.1} parent=5 // pred_region
        // Predicated region
        $region37: #{tpu_custom_call.1} parent=35 // pred_check
          %p241 = pneg %p40
        $region38: #{tpu_custom_call.1} parent=35 // pred_check_branch
          %243 = sbr.rel (%p241) target = $region40
        $region39: #{tpu_custom_call.1} parent=35 // pred_region
          %s244 = sand.u32 %s30, 1
          %s245 = scalar_lea.sflag [#allocation3], %s244
          %s246 = sand.u32 %s30, 1
          %s247 = smul.addr %s246, 8
          %s248 = scalar_lea.vmem [#allocation2], %s247
          %s250 = ssub.s32 128, 128
          %251 = vsyncadd %s245, %s250
          %s252 = smul.addr %s20, 128
          %s253 = scalar_lea.hbm %s0, %s252
          %s255 = sshll.u32 %s248, 4
          %s256 = int_to_ptr.vmem [resolvable:$true] %s255
          %258 = dma.hbm_to_vmem [thread:$0]  %s253, 128, %s256, %s245
        $region40: #{tpu_custom_call.1} parent=35 // pred_fallthru
          _
      $region36: #{tpu_custom_call.1} parent=5 // pred_fallthru
        _
      %p259 = scmp.le.s32.totalorder 1, %s20
      %p260 = scmp.lt.s32.totalorder %s20, 3
      %p261 = pnand %p259, %p260
      %p262 = pneg %p261
      // Predicated region
      $region41: #{tpu_custom_call.1} parent=5 // pred_check
        _
      $region42: #{tpu_custom_call.1} parent=5 // pred_check_branch
        %264 = sbr.rel (%p261) target = $region44
      $region43: #{tpu_custom_call.1} parent=5 // pred_region
        %s265 = ssub.s32 %s20, 1
        %s266 = sand.u32 %s33, 1
        %s267 = scalar_lea.sflag [#allocation3], %s266
        %s268 = sand.u32 %s33, 1
        %s269 = smul.addr %s268, 8
        %s270 = scalar_lea.vmem [#allocation2], %s269
        // Predicated region
        $region45: #{tpu_custom_call.1} parent=43 // pred_check
          %p271 = pneg %p46
        $region46: #{tpu_custom_call.1} parent=43 // pred_check_branch
          %273 = sbr.rel (%p271) target = $region48
        $region47: #{tpu_custom_call.1} parent=43 // pred_region
          %274 = dma.done %s267, 128
        $region48: #{tpu_custom_call.1} parent=43 // pred_fallthru
          _
        // Predicated region
        $region49: #{tpu_custom_call.1} parent=43 // pred_check
          %p275 = pneg %p67
        $region50: #{tpu_custom_call.1} parent=43 // pred_check_branch
          %277 = sbr.rel (%p275) target = $region52
        $region51: #{tpu_custom_call.1} parent=43 // pred_region
          %278 = dma.done [#allocation6], 1024
        $region52: #{tpu_custom_call.1} parent=43 // pred_fallthru
          _
        // Predicated region
        $region53: #{tpu_custom_call.1} parent=43 // pred_check
          %p279 = pneg %p88
        $region54: #{tpu_custom_call.1} parent=43 // pred_check_branch
          %281 = sbr.rel (%p279) target = $region56
        $region55: #{tpu_custom_call.1} parent=43 // pred_region
          %282 = dma.done [#allocation6], 384
        $region56: #{tpu_custom_call.1} parent=43 // pred_fallthru
          _
        // Predicated region
        $region57: #{tpu_custom_call.1} parent=43 // pred_check
          %p283 = pneg %p130
        $region58: #{tpu_custom_call.1} parent=43 // pred_check_branch
          %285 = sbr.rel (%p283) target = $region60
        $region59: #{tpu_custom_call.1} parent=43 // pred_region
          %286 = dma.done [#allocation9], 2048
        $region60: #{tpu_custom_call.1} parent=43 // pred_fallthru
          _
        %s287 = sand.u32 %s33, 1
        %s288 = scalar_lea.sflag [#allocation3], %s287
        %s289 = sand.u32 %s33, 1
        %s290 = smul.addr %s289, 8
        %s291 = scalar_lea.vmem [#allocation2], %s290
        %p292 = pneg %p46
        %p293 = pneg %p43
        %p294 = pneg %p67
        %p295 = pneg %p64
        %p296 = pneg %p88
        %p297 = pneg %p85
        %p298 = pneg %p109
        %p299 = pneg %p106
        %p300 = pneg %p130
        %p301 = pneg %p127
        %p302 = pneg %p151
        %p303 = pneg %p148
        %p304 = pneg %p177
        %p305 = pneg %p174
        %s306 = sand.u32 %s164, 1
        %s307 = scalar_lea.sflag [#allocation4], %s306
        %s308 = sand.u32 %s164, 1
        %s309 = smul.addr %s308, 8
        %s310 = scalar_lea.vmem [#allocation10], %s309
        %v312 = vld [vmem:[%s270] sm:$0xff]
        %v313 = vlaneseq
        %v314 = vand.u32 %v313, 127
        %v315 = vlaneseq
        %v316 = vshrl.u32 %v315, 7
        %v317 = vsub.s32 0, %v316
        %v318 = vrot.slane %v312, %v317
        %320 = vbcast.lane.b32.xlu0 %v318, 256
        %v321 = vpop.permute.xlu0 %320
        %s323 = sor.u32 256, 8
        %324 = vbcast.lane.b32.xlu0 %v318, %s323
        %v325 = vpop.permute.xlu0 %324
        %s327 = sor.u32 256, 16
        %328 = vbcast.lane.b32.xlu0 %v318, %s327
        %v329 = vpop.permute.xlu0 %328
        %v330 = vlaneseq
        %v331 = vshrl.u32 %v330, 7
        %v332 = vsub.s32 1, %v331
        %v333 = vrot.slane %v312, %v332
        %335 = vbcast.lane.b32.xlu0 %v333, 256
        %v336 = vpop.permute.xlu0 %335
        %s338 = sor.u32 256, 8
        %339 = vbcast.lane.b32.xlu0 %v333, %s338
        %v340 = vpop.permute.xlu0 %339
        %s342 = sor.u32 256, 16
        %343 = vbcast.lane.b32.xlu0 %v333, %s342
        %v344 = vpop.permute.xlu0 %343
        %v345 = vlaneseq
        %v346 = vshrl.u32 %v345, 7
        %v347 = vsub.s32 2, %v346
        %v348 = vrot.slane %v312, %v347
        %350 = vbcast.lane.b32.xlu0 %v348, 256
        %v351 = vpop.permute.xlu0 %350
        %s353 = sor.u32 256, 8
        %354 = vbcast.lane.b32.xlu0 %v348, %s353
        %v355 = vpop.permute.xlu0 %354
        %s357 = sor.u32 256, 16
        %358 = vbcast.lane.b32.xlu0 %v348, %s357
        %v359 = vpop.permute.xlu0 %358
        %v360 = vlaneseq
        %v361 = vshrl.u32 %v360, 7
        %v362 = vsub.s32 3, %v361
        %v363 = vrot.slane %v312, %v362
        %365 = vbcast.lane.b32.xlu0 %v363, 256
        %v366 = vpop.permute.xlu0 %365
        %s368 = sor.u32 256, 8
        %369 = vbcast.lane.b32.xlu0 %v363, %s368
        %v370 = vpop.permute.xlu0 %369
        %s372 = sor.u32 256, 16
        %373 = vbcast.lane.b32.xlu0 %v363, %s372
        %v374 = vpop.permute.xlu0 %373
        %v375 = vlaneseq
        %v376 = vshrl.u32 %v375, 7
        %v377 = vsub.s32 4, %v376
        %v378 = vrot.slane %v312, %v377
        %380 = vbcast.lane.b32.xlu0 %v378, 256
        %v381 = vpop.permute.xlu0 %380
        %s383 = sor.u32 256, 8
        %384 = vbcast.lane.b32.xlu0 %v378, %s383
        %v385 = vpop.permute.xlu0 %384
        %s387 = sor.u32 256, 16
        %388 = vbcast.lane.b32.xlu0 %v378, %s387
        %v389 = vpop.permute.xlu0 %388
        %v390 = vlaneseq
        %v391 = vshrl.u32 %v390, 7
        %v392 = vsub.s32 5, %v391
        %v393 = vrot.slane %v312, %v392
        %395 = vbcast.lane.b32.xlu0 %v393, 256
        %v396 = vpop.permute.xlu0 %395
        %s398 = sor.u32 256, 8
        %399 = vbcast.lane.b32.xlu0 %v393, %s398
        %v400 = vpop.permute.xlu0 %399
        %s402 = sor.u32 256, 16
        %403 = vbcast.lane.b32.xlu0 %v393, %s402
        %v404 = vpop.permute.xlu0 %403
        %v405 = vlaneseq
        %v406 = vshrl.u32 %v405, 7
        %v407 = vsub.s32 6, %v406
        %v408 = vrot.slane %v312, %v407
        %410 = vbcast.lane.b32.xlu0 %v408, 256
        %v411 = vpop.permute.xlu0 %410
        %s413 = sor.u32 256, 8
        %414 = vbcast.lane.b32.xlu0 %v408, %s413
        %v415 = vpop.permute.xlu0 %414
        %s417 = sor.u32 256, 16
        %418 = vbcast.lane.b32.xlu0 %v408, %s417
        %v419 = vpop.permute.xlu0 %418
        %v420 = vlaneseq
        %v421 = vshrl.u32 %v420, 7
        %v422 = vsub.s32 7, %v421
        %v423 = vrot.slane %v312, %v422
        %425 = vbcast.lane.b32.xlu0 %v423, 256
        %v426 = vpop.permute.xlu0 %425
        %s428 = sor.u32 256, 8
        %429 = vbcast.lane.b32.xlu0 %v423, %s428
        %v430 = vpop.permute.xlu0 %429
        %s432 = sor.u32 256, 16
        %433 = vbcast.lane.b32.xlu0 %v423, %s432
        %v434 = vpop.permute.xlu0 %433
        %vm435 = vcmp.eq.s32.totalorder %v314, %v321
        %vm436 = vcmp.eq.s32.totalorder %v314, %v325
        %vm437 = vcmp.eq.s32.totalorder %v314, %v329
        %vm438 = vcmp.eq.s32.totalorder %v314, %v336
        %vm439 = vcmp.eq.s32.totalorder %v314, %v340
        %vm440 = vcmp.eq.s32.totalorder %v314, %v344
        %vm441 = vcmp.eq.s32.totalorder %v314, %v351
        %vm442 = vcmp.eq.s32.totalorder %v314, %v355
        %vm443 = vcmp.eq.s32.totalorder %v314, %v359
        %vm444 = vcmp.eq.s32.totalorder %v314, %v366
        %vm445 = vcmp.eq.s32.totalorder %v314, %v370
        %vm446 = vcmp.eq.s32.totalorder %v314, %v374
        %vm447 = vcmp.eq.s32.totalorder %v314, %v381
        %vm448 = vcmp.eq.s32.totalorder %v314, %v385
        %vm449 = vcmp.eq.s32.totalorder %v314, %v389
        %vm450 = vcmp.eq.s32.totalorder %v314, %v396
        %vm451 = vcmp.eq.s32.totalorder %v314, %v400
        %vm452 = vcmp.eq.s32.totalorder %v314, %v404
        %vm453 = vcmp.eq.s32.totalorder %v314, %v411
        %vm454 = vcmp.eq.s32.totalorder %v314, %v415
        %vm455 = vcmp.eq.s32.totalorder %v314, %v419
        %vm456 = vcmp.eq.s32.totalorder %v314, %v426
        %vm457 = vcmp.eq.s32.totalorder %v314, %v430
        %vm458 = vcmp.eq.s32.totalorder %v314, %v434
        %v459 = vsel %vm435, 1, 0
        %v460 = vsel %vm436, 1, 0
        %v461 = vsel %vm437, 1, 0
        %v462 = vsel %vm438, 1, 0
        %v463 = vsel %vm439, 1, 0
        %v464 = vsel %vm440, 1, 0
        %v465 = vsel %vm441, 1, 0
        %v466 = vsel %vm442, 1, 0
        %v467 = vsel %vm443, 1, 0
        %v468 = vsel %vm444, 1, 0
        %v469 = vsel %vm445, 1, 0
        %v470 = vsel %vm446, 1, 0
        %v471 = vsel %vm447, 1, 0
        %v472 = vsel %vm448, 1, 0
        %v473 = vsel %vm449, 1, 0
        %v474 = vsel %vm450, 1, 0
        %v475 = vsel %vm451, 1, 0
        %v476 = vsel %vm452, 1, 0
        %v477 = vsel %vm453, 1, 0
        %v478 = vsel %vm454, 1, 0
        %v479 = vsel %vm455, 1, 0
        %v480 = vsel %vm456, 1, 0
        %v481 = vsel %vm457, 1, 0
        %v482 = vsel %vm458, 1, 0
        %v483 = vcvt.s32.f32 %v459
        %v484 = vcvt.s32.f32 %v460
        %v485 = vcvt.s32.f32 %v461
        %v486 = vcvt.s32.f32 %v462
        %v487 = vcvt.s32.f32 %v463
        %v488 = vcvt.s32.f32 %v464
        %v489 = vcvt.s32.f32 %v465
        %v490 = vcvt.s32.f32 %v466
        %v491 = vcvt.s32.f32 %v467
        %v492 = vcvt.s32.f32 %v468
        %v493 = vcvt.s32.f32 %v469
        %v494 = vcvt.s32.f32 %v470
        %v495 = vcvt.s32.f32 %v471
        %v496 = vcvt.s32.f32 %v472
        %v497 = vcvt.s32.f32 %v473
        %v498 = vcvt.s32.f32 %v474
        %v499 = vcvt.s32.f32 %v475
        %v500 = vcvt.s32.f32 %v476
        %v501 = vcvt.s32.f32 %v477
        %v502 = vcvt.s32.f32 %v478
        %v503 = vcvt.s32.f32 %v479
        %v504 = vcvt.s32.f32 %v480
        %v505 = vcvt.s32.f32 %v481
        %v506 = vcvt.s32.f32 %v482
        %v507 = vpack.c.bf16 %v484, %v483
        %v508 = vpack.c.bf16 %v485, %v485
        %v509 = vpack.c.bf16 %v487, %v486
        %v510 = vpack.c.bf16 %v488, %v488
        %v511 = vpack.c.bf16 %v490, %v489
        %v512 = vpack.c.bf16 %v491, %v491
        %v513 = vpack.c.bf16 %v493, %v492
        %v514 = vpack.c.bf16 %v494, %v494
        %v515 = vpack.c.bf16 %v496, %v495
        %v516 = vpack.c.bf16 %v497, %v497
        %v517 = vpack.c.bf16 %v499, %v498
        %v518 = vpack.c.bf16 %v500, %v500
        %v519 = vpack.c.bf16 %v502, %v501
        %v520 = vpack.c.bf16 %v503, %v503
        %v521 = vpack.c.bf16 %v505, %v504
        %v522 = vpack.c.bf16 %v506, %v506
        %v539 = vunpack.c.l.b16 %v507
        %v540 = vunpack.c.h.b16 %v507
        %v541 = vunpack.c.l.b16 %v508
        %v542 = vunpack.c.l.b16 %v509
        %v543 = vunpack.c.h.b16 %v509
        %v544 = vunpack.c.l.b16 %v510
        %v545 = vunpack.c.l.b16 %v511
        %v546 = vunpack.c.h.b16 %v511
        %v547 = vunpack.c.l.b16 %v512
        %v548 = vunpack.c.l.b16 %v513
        %v549 = vunpack.c.h.b16 %v513
        %v550 = vunpack.c.l.b16 %v514
        %v551 = vunpack.c.l.b16 %v515
        %v552 = vunpack.c.h.b16 %v515
        %v553 = vunpack.c.l.b16 %v516
        %v554 = vunpack.c.l.b16 %v517
        %v555 = vunpack.c.h.b16 %v517
        %v556 = vunpack.c.l.b16 %v518
        %v557 = vunpack.c.l.b16 %v519
        %v558 = vunpack.c.h.b16 %v519
        %v559 = vunpack.c.l.b16 %v520
        %v560 = vunpack.c.l.b16 %v521
        %v561 = vunpack.c.h.b16 %v521
        %v562 = vunpack.c.l.b16 %v522
        %v563 = vld [vmem:[#allocation5] sm:$0xf]
        %v564 = vld [vmem:[#allocation5 + $0x4] sm:$0xf]
        %v565 = vld [vmem:[#allocation5 + $0x8] sm:$0xf]
        %v566 = vld [vmem:[#allocation5 + $0xc] sm:$0xf]
        %v567 = vld [vmem:[#allocation5 + $0x10] sm:$0xf]
        %v568 = vld [vmem:[#allocation5 + $0x14] sm:$0xf]
        %v569 = vld [vmem:[#allocation5 + $0x18] sm:$0xf]
        %v570 = vld [vmem:[#allocation5 + $0x1c] sm:$0xf]
        %v571 = vld [vmem:[#allocation5 + $0x20] sm:$0xf]
        %v572 = vld [vmem:[#allocation5 + $0x24] sm:$0xf]
        %v573 = vld [vmem:[#allocation5 + $0x28] sm:$0xf]
        %v574 = vld [vmem:[#allocation5 + $0x2c] sm:$0xf]
        %v575 = vld [vmem:[#allocation5 + $0x30] sm:$0xf]
        %v576 = vld [vmem:[#allocation5 + $0x34] sm:$0xf]
        %v577 = vld [vmem:[#allocation5 + $0x38] sm:$0xf]
        %v578 = vld [vmem:[#allocation5 + $0x3c] sm:$0xf]
        %v579 = vpack.c.b16 %v540, %v539
        %v580 = vpack.c.b16 %v542, %v541
        %v581 = vpack.c.b16 %v544, %v543
        %v582 = vpack.c.b16 %v546, %v545
        %v583 = vpack.c.b16 %v548, %v547
        %v584 = vpack.c.b16 %v550, %v549
        %v585 = vpack.c.b16 %v552, %v551
        %v586 = vpack.c.b16 %v554, %v553
        %v587 = vpack.c.b16 %v556, %v555
        %v588 = vpack.c.b16 %v558, %v557
        %v589 = vpack.c.b16 %v560, %v559
        %v590 = vpack.c.b16 %v562, %v561
        %v619 = vunpack.c.l.b16 %v563
        %v620 = vunpack.c.l.b16 %v564
        %v621 = vunpack.c.l.b16 %v565
        %v622 = vunpack.c.l.b16 %v566
        %v623 = vunpack.c.l.b16 %v567
        %v624 = vunpack.c.l.b16 %v568
        %v625 = vunpack.c.l.b16 %v569
        %v626 = vunpack.c.l.b16 %v570
        %v627 = vunpack.c.l.b16 %v571
        %v628 = vunpack.c.l.b16 %v572
        %v629 = vunpack.c.l.b16 %v573
        %v630 = vunpack.c.l.b16 %v574
        %v631 = vunpack.c.l.b16 %v575
        %v632 = vunpack.c.l.b16 %v576
        %v633 = vunpack.c.l.b16 %v577
        %v634 = vunpack.c.l.b16 %v578
        %v635 = vpack.c.b16 %v620, %v619
        %v636 = vpack.c.b16 %v622, %v621
        %v637 = vpack.c.b16 %v624, %v623
        %v638 = vpack.c.b16 %v626, %v625
        %v639 = vpack.c.b16 %v628, %v627
        %v640 = vpack.c.b16 %v630, %v629
        %v641 = vpack.c.b16 %v632, %v631
        %v642 = vpack.c.b16 %v634, %v633
        %651 = vmatprep.subr.bf16.mxu0 0
        %652 = vmatpush1.bf16.msra.mxu0 %v635
        %653 = vmatprep.subr.bf16.mxu0 0
        %654 = vmatpush1.bf16.msra.mxu0 %v636
        %655 = vmatprep.subr.bf16.mxu0 0
        %656 = vmatpush1.bf16.msra.mxu0 %v637
        %657 = vmatprep.subr.bf16.mxu0 0
        %658 = vmatpush1.bf16.msra.mxu0 %v638
        %659 = vmatprep.subr.bf16.mxu0 0
        %660 = vmatpush1.bf16.msra.mxu0 %v639
        %661 = vmatprep.subr.bf16.mxu0 0
        %662 = vmatpush1.bf16.msra.mxu0 %v640
        %663 = vmatprep.subr.bf16.mxu0 0
        %664 = vmatpush1.bf16.msra.mxu0 %v641
        %665 = vmatprep.subr.bf16.mxu0 0
        %666 = vmatpush1.bf16.msra.mxu0 %v642
        %667 = vmatprep.subr.bf16.mxu0 0
        %668 = vmatpush1.bf16.msra.mxu0 0
        %669 = vmatprep.subr.bf16.mxu0 0
        %670 = vmatpush1.bf16.msra.mxu0 0
        %671 = vmatprep.subr.bf16.mxu0 0
        %672 = vmatpush1.bf16.msra.mxu0 0
        %673 = vmatprep.subr.bf16.mxu0 0
        %674 = vmatpush1.bf16.msra.mxu0 0
        %675 = vmatprep.subr.bf16.mxu0 0
        %676 = vmatpush1.bf16.msra.mxu0 0
        %677 = vmatprep.subr.bf16.mxu0 0
        %678 = vmatpush1.bf16.msra.mxu0 0
        %679 = vmatprep.subr.bf16.mxu0 0
        %680 = vmatpush1.bf16.msra.mxu0 0
        %681 = vmatprep.subr.bf16.mxu0 0
        %682 = vmatpush1.bf16.msra.mxu0 0
        %683 = vmatprep.mubr.bf16.mxu0 0
        %684 = vmatmul.mubr.bf16.gmra.mrb[0].mxu0 %v579
        %v685 = vpop.f32.mrb[0].mxu0
        %v686 = vadd.f32 0.0, %v685
        %v687 = vpop.f32.mrb[0].mxu0
        %v688 = vpop.f32.mrb[0].mxu0
        %v689 = vadd.f32 0.0, %v688
        %v690 = vpop.f32.mrb[0].mxu0
        %691 = vmatprep.mubr.bf16.mxu0 0
        %692 = vmatmul.mubr.bf16.gmra.mrb[0].mxu0 %v580
        %v693 = vpop.f32.mrb[0].mxu0
        %v694 = vadd.f32 0.0, %v693
        %v695 = vpop.f32.mrb[0].mxu0
        %v696 = vpop.f32.mrb[0].mxu0
        %v697 = vadd.f32 0.0, %v696
        %v698 = vpop.f32.mrb[0].mxu0
        %699 = vmatprep.mubr.bf16.mxu0 0
        %700 = vmatmul.mubr.bf16.gmra.mrb[0].mxu0 %v581
        %v701 = vpop.f32.mrb[0].mxu0
        %v702 = vadd.f32 0.0, %v701
        %v703 = vpop.f32.mrb[0].mxu0
        %v704 = vpop.f32.mrb[0].mxu0
        %v705 = vadd.f32 0.0, %v704
        %v706 = vpop.f32.mrb[0].mxu0
        %707 = vmatprep.mubr.bf16.mxu0 0
        %708 = vmatmul.mubr.bf16.gmra.mrb[0].mxu0 %v582
        %v709 = vpop.f32.mrb[0].mxu0
        %v710 = vadd.f32 0.0, %v709
        %v711 = vpop.f32.mrb[0].mxu0
        %v712 = vpop.f32.mrb[0].mxu0
        %v713 = vadd.f32 0.0, %v712
        %v714 = vpop.f32.mrb[0].mxu0
        %715 = vmatprep.mubr.bf16.mxu0 0
        %716 = vmatmul.mubr.bf16.gmra.mrb[0].mxu0 %v583
        %v717 = vpop.f32.mrb[0].mxu0
        %v718 = vadd.f32 0.0, %v717
        %v719 = vpop.f32.mrb[0].mxu0
        %v720 = vpop.f32.mrb[0].mxu0
        %v721 = vadd.f32 0.0, %v720
        %v722 = vpop.f32.mrb[0].mxu0
        %723 = vmatprep.mubr.bf16.mxu0 0
        %724 = vmatmul.mubr.bf16.gmra.mrb[0].mxu0 %v584
        %v725 = vpop.f32.mrb[0].mxu0
        %v726 = vadd.f32 0.0, %v725
        %v727 = vpop.f32.mrb[0].mxu0
        %v728 = vpop.f32.mrb[0].mxu0
        %v729 = vadd.f32 0.0, %v728
        %v730 = vpop.f32.mrb[0].mxu0
        %731 = vmatprep.mubr.bf16.mxu0 0
        %732 = vmatmul.mubr.bf16.gmra.mrb[0].mxu0 %v585
        %v733 = vpop.f32.mrb[0].mxu0
        %v734 = vadd.f32 0.0, %v733
        %v735 = vpop.f32.mrb[0].mxu0
        %v736 = vpop.f32.mrb[0].mxu0
        %v737 = vadd.f32 0.0, %v736
        %v738 = vpop.f32.mrb[0].mxu0
        %739 = vmatprep.mubr.bf16.mxu0 0
        %740 = vmatmul.mubr.bf16.gmra.mrb[0].mxu0 %v586
        %v741 = vpop.f32.mrb[0].mxu0
        %v742 = vadd.f32 0.0, %v741
        %v743 = vpop.f32.mrb[0].mxu0
        %v744 = vpop.f32.mrb[0].mxu0
        %v745 = vadd.f32 0.0, %v744
        %v746 = vpop.f32.mrb[0].mxu0
        %747 = vmatprep.mubr.bf16.mxu0 0
        %748 = vmatmul.mubr.bf16.gmra.mrb[0].mxu0 %v587
        %v749 = vpop.f32.mrb[0].mxu0
        %v750 = vadd.f32 0.0, %v749
        %v751 = vpop.f32.mrb[0].mxu0
        %v752 = vpop.f32.mrb[0].mxu0
        %v753 = vadd.f32 0.0, %v752
        %v754 = vpop.f32.mrb[0].mxu0
        %755 = vmatprep.mubr.bf16.mxu0 0
        %756 = vmatmul.mubr.bf16.gmra.mrb[0].mxu0 %v588
        %v757 = vpop.f32.mrb[0].mxu0
        %v758 = vadd.f32 0.0, %v757
        %v759 = vpop.f32.mrb[0].mxu0
        %v760 = vpop.f32.mrb[0].mxu0
        %v761 = vadd.f32 0.0, %v760
        %v762 = vpop.f32.mrb[0].mxu0
        %763 = vmatprep.mubr.bf16.mxu0 0
        %764 = vmatmul.mubr.bf16.gmra.mrb[0].mxu0 %v589
        %v765 = vpop.f32.mrb[0].mxu0
        %v766 = vadd.f32 0.0, %v765
        %v767 = vpop.f32.mrb[0].mxu0
        %v768 = vpop.f32.mrb[0].mxu0
        %v769 = vadd.f32 0.0, %v768
        %v770 = vpop.f32.mrb[0].mxu0
        %771 = vmatprep.mubr.bf16.mxu0 0
        %772 = vmatmul.mubr.bf16.gmra.mrb[0].mxu0 %v590
        %v773 = vpop.f32.mrb[0].mxu0
        %v774 = vadd.f32 0.0, %v773
        %v775 = vpop.f32.mrb[0].mxu0
        %v776 = vpop.f32.mrb[0].mxu0
        %v777 = vadd.f32 0.0, %v776
        %v778 = vpop.f32.mrb[0].mxu0
        %779 = vdwg.mxu0
        %v780 = vrot.slane %v686, 1
        %v781 = vrot.slane %v689, 1
        %v782 = vrot.slane %v694, 1
        %v783 = vrot.slane %v697, 1
        %v784 = vrot.slane %v702, 1
        %v785 = vrot.slane %v705, 1
        %v786 = vrot.slane %v710, 1
        %v787 = vrot.slane %v713, 1
        %v788 = vrot.slane %v718, 1
        %v789 = vrot.slane %v721, 1
        %v790 = vrot.slane %v726, 1
        %v791 = vrot.slane %v729, 1
        %v792 = vrot.slane %v734, 1
        %v793 = vrot.slane %v737, 1
        %v794 = vrot.slane %v742, 1
        %v795 = vrot.slane %v745, 1
        %v796 = vrot.slane %v750, 1
        %v797 = vrot.slane %v753, 1
        %v798 = vrot.slane %v758, 1
        %v799 = vrot.slane %v761, 1
        %v800 = vrot.slane %v766, 1
        %v801 = vrot.slane %v769, 1
        %v802 = vrot.slane %v774, 1
        %v803 = vrot.slane %v777, 1
        %v804 = vlaneseq
        %v805 = vshrl.u32 %v804, 7
        %vm806 = vcmp.lt.s32.totalorder %v805, 7
        %v807 = vsel %vm806, %v802, %v803
        %v808 = vsel %vm806, %v801, %v802
        %v809 = vsel %vm806, %v800, %v801
        %v810 = vsel %vm806, %v799, %v800
        %v811 = vsel %vm806, %v798, %v799
        %v812 = vsel %vm806, %v797, %v798
        %v813 = vsel %vm806, %v796, %v797
        %v814 = vsel %vm806, %v795, %v796
        %v815 = vsel %vm806, %v794, %v795
        %v816 = vsel %vm806, %v793, %v794
        %v817 = vsel %vm806, %v792, %v793
        %v818 = vsel %vm806, %v791, %v792
        %v819 = vsel %vm806, %v790, %v791
        %v820 = vsel %vm806, %v789, %v790
        %v821 = vsel %vm806, %v788, %v789
        %v822 = vsel %vm806, %v787, %v788
        %v823 = vsel %vm806, %v786, %v787
        %v824 = vsel %vm806, %v785, %v786
        %v825 = vsel %vm806, %v784, %v785
        %v826 = vsel %vm806, %v783, %v784
        %v827 = vsel %vm806, %v782, %v783
        %v828 = vsel %vm806, %v781, %v782
        %v829 = vsel %vm806, %v780, %v781
        %v830 = vsel %vm806, %v803, %v780
        %831 = vrot.lane.b32.xlu0 %v829, 96
        %v832 = vpop.permute.xlu0 %831
        %833 = vrot.lane.b32.xlu0 %v828, 96
        %v834 = vpop.permute.xlu0 %833
        %835 = vrot.lane.b32.xlu0 %v827, 96
        %v836 = vpop.permute.xlu0 %835
        %837 = vrot.lane.b32.xlu0 %v826, 96
        %v838 = vpop.permute.xlu0 %837
        %839 = vrot.lane.b32.xlu0 %v825, 96
        %v840 = vpop.permute.xlu0 %839
        %841 = vrot.lane.b32.xlu0 %v824, 96
        %v842 = vpop.permute.xlu0 %841
        %843 = vrot.lane.b32.xlu0 %v823, 96
        %v844 = vpop.permute.xlu0 %843
        %845 = vrot.lane.b32.xlu0 %v822, 96
        %v846 = vpop.permute.xlu0 %845
        %847 = vrot.lane.b32.xlu0 %v821, 96
        %v848 = vpop.permute.xlu0 %847
        %849 = vrot.lane.b32.xlu0 %v820, 96
        %v850 = vpop.permute.xlu0 %849
        %851 = vrot.lane.b32.xlu0 %v819, 96
        %v852 = vpop.permute.xlu0 %851
        %853 = vrot.lane.b32.xlu0 %v818, 96
        %v854 = vpop.permute.xlu0 %853
        %855 = vrot.lane.b32.xlu0 %v817, 96
        %v856 = vpop.permute.xlu0 %855
        %857 = vrot.lane.b32.xlu0 %v816, 96
        %v858 = vpop.permute.xlu0 %857
        %859 = vrot.lane.b32.xlu0 %v815, 96
        %v860 = vpop.permute.xlu0 %859
        %861 = vrot.lane.b32.xlu0 %v814, 96
        %v862 = vpop.permute.xlu0 %861
        %863 = vrot.lane.b32.xlu0 %v813, 96
        %v864 = vpop.permute.xlu0 %863
        %865 = vrot.lane.b32.xlu0 %v812, 96
        %v866 = vpop.permute.xlu0 %865
        %867 = vrot.lane.b32.xlu0 %v811, 96
        %v868 = vpop.permute.xlu0 %867
        %869 = vrot.lane.b32.xlu0 %v810, 96
        %v870 = vpop.permute.xlu0 %869
        %871 = vrot.lane.b32.xlu0 %v809, 96
        %v872 = vpop.permute.xlu0 %871
        %873 = vrot.lane.b32.xlu0 %v808, 96
        %v874 = vpop.permute.xlu0 %873
        %875 = vrot.lane.b32.xlu0 %v807, 96
        %v876 = vpop.permute.xlu0 %875
        %877 = vrot.lane.b32.xlu0 %v830, 96
        %v878 = vpop.permute.xlu0 %877
        %v879 = vadd.f32 %v686, %v832
        %v880 = vadd.f32 %v689, %v834
        %v881 = vadd.f32 %v694, %v836
        %v882 = vadd.f32 %v697, %v838
        %v883 = vadd.f32 %v702, %v840
        %v884 = vadd.f32 %v705, %v842
        %v885 = vadd.f32 %v710, %v844
        %v886 = vadd.f32 %v713, %v846
        %v887 = vadd.f32 %v718, %v848
        %v888 = vadd.f32 %v721, %v850
        %v889 = vadd.f32 %v726, %v852
        %v890 = vadd.f32 %v729, %v854
        %v891 = vadd.f32 %v734, %v856
        %v892 = vadd.f32 %v737, %v858
        %v893 = vadd.f32 %v742, %v860
        %v894 = vadd.f32 %v745, %v862
        %v895 = vadd.f32 %v750, %v864
        %v896 = vadd.f32 %v753, %v866
        %v897 = vadd.f32 %v758, %v868
        %v898 = vadd.f32 %v761, %v870
        %v899 = vadd.f32 %v766, %v872
        %v900 = vadd.f32 %v769, %v874
        %v901 = vadd.f32 %v774, %v876
        %v902 = vadd.f32 %v777, %v878
        %v903 = vrot.slane %v686, 2
        %v904 = vrot.slane %v689, 2
        %v905 = vrot.slane %v694, 2
        %v906 = vrot.slane %v697, 2
        %v907 = vrot.slane %v702, 2
        %v908 = vrot.slane %v705, 2
        %v909 = vrot.slane %v710, 2
        %v910 = vrot.slane %v713, 2
        %v911 = vrot.slane %v718, 2
        %v912 = vrot.slane %v721, 2
        %v913 = vrot.slane %v726, 2
        %v914 = vrot.slane %v729, 2
        %v915 = vrot.slane %v734, 2
        %v916 = vrot.slane %v737, 2
        %v917 = vrot.slane %v742, 2
        %v918 = vrot.slane %v745, 2
        %v919 = vrot.slane %v750, 2
        %v920 = vrot.slane %v753, 2
        %v921 = vrot.slane %v758, 2
        %v922 = vrot.slane %v761, 2
        %v923 = vrot.slane %v766, 2
        %v924 = vrot.slane %v769, 2
        %v925 = vrot.slane %v774, 2
        %v926 = vrot.slane %v777, 2
        %vm927 = vcmp.lt.s32.totalorder %v805, 6
        %v928 = vsel %vm927, %v925, %v926
        %v929 = vsel %vm927, %v924, %v925
        %v930 = vsel %vm927, %v923, %v924
        %v931 = vsel %vm927, %v922, %v923
        %v932 = vsel %vm927, %v921, %v922
        %v933 = vsel %vm927, %v920, %v921
        %v934 = vsel %vm927, %v919, %v920
        %v935 = vsel %vm927, %v918, %v919
        %v936 = vsel %vm927, %v917, %v918
        %v937 = vsel %vm927, %v916, %v917
        %v938 = vsel %vm927, %v915, %v916
        %v939 = vsel %vm927, %v914, %v915
        %v940 = vsel %vm927, %v913, %v914
        %v941 = vsel %vm927, %v912, %v913
        %v942 = vsel %vm927, %v911, %v912
        %v943 = vsel %vm927, %v910, %v911
        %v944 = vsel %vm927, %v909, %v910
        %v945 = vsel %vm927, %v908, %v909
        %v946 = vsel %vm927, %v907, %v908
        %v947 = vsel %vm927, %v906, %v907
        %v948 = vsel %vm927, %v905, %v906
        %v949 = vsel %vm927, %v904, %v905
        %v950 = vsel %vm927, %v903, %v904
        %v951 = vsel %vm927, %v926, %v903
        %952 = vrot.lane.b32.xlu0 %v950, 64
        %v953 = vpop.permute.xlu0 %952
        %954 = vrot.lane.b32.xlu0 %v949, 64
        %v955 = vpop.permute.xlu0 %954
        %956 = vrot.lane.b32.xlu0 %v948, 64
        %v957 = vpop.permute.xlu0 %956
        %958 = vrot.lane.b32.xlu0 %v947, 64
        %v959 = vpop.permute.xlu0 %958
        %960 = vrot.lane.b32.xlu0 %v946, 64
        %v961 = vpop.permute.xlu0 %960
        %962 = vrot.lane.b32.xlu0 %v945, 64
        %v963 = vpop.permute.xlu0 %962
        %964 = vrot.lane.b32.xlu0 %v944, 64
        %v965 = vpop.permute.xlu0 %964
        %966 = vrot.lane.b32.xlu0 %v943, 64
        %v967 = vpop.permute.xlu0 %966
        %968 = vrot.lane.b32.xlu0 %v942, 64
        %v969 = vpop.permute.xlu0 %968
        %970 = vrot.lane.b32.xlu0 %v941, 64
        %v971 = vpop.permute.xlu0 %970
        %972 = vrot.lane.b32.xlu0 %v940, 64
        %v973 = vpop.permute.xlu0 %972
        %974 = vrot.lane.b32.xlu0 %v939, 64
        %v975 = vpop.permute.xlu0 %974
        %976 = vrot.lane.b32.xlu0 %v938, 64
        %v977 = vpop.permute.xlu0 %976
        %978 = vrot.lane.b32.xlu0 %v937, 64
        %v979 = vpop.permute.xlu0 %978
        %980 = vrot.lane.b32.xlu0 %v936, 64
        %v981 = vpop.permute.xlu0 %980
        %982 = vrot.lane.b32.xlu0 %v935, 64
        %v983 = vpop.permute.xlu0 %982
        %984 = vrot.lane.b32.xlu0 %v934, 64
        %v985 = vpop.permute.xlu0 %984
        %986 = vrot.lane.b32.xlu0 %v933, 64
        %v987 = vpop.permute.xlu0 %986
        %988 = vrot.lane.b32.xlu0 %v932, 64
        %v989 = vpop.permute.xlu0 %988
        %990 = vrot.lane.b32.xlu0 %v931, 64
        %v991 = vpop.permute.xlu0 %990
        %992 = vrot.lane.b32.xlu0 %v930, 64
        %v993 = vpop.permute.xlu0 %992
        %994 = vrot.lane.b32.xlu0 %v929, 64
        %v995 = vpop.permute.xlu0 %994
        %996 = vrot.lane.b32.xlu0 %v928, 64
        %v997 = vpop.permute.xlu0 %996
        %998 = vrot.lane.b32.xlu0 %v951, 64
        %v999 = vpop.permute.xlu0 %998
        %v1000 = vadd.f32 %v879, %v953
        %v1001 = vadd.f32 %v880, %v955
        %v1002 = vadd.f32 %v881, %v957
        %v1003 = vadd.f32 %v882, %v959
        %v1004 = vadd.f32 %v883, %v961
        %v1005 = vadd.f32 %v884, %v963
        %v1006 = vadd.f32 %v885, %v965
        %v1007 = vadd.f32 %v886, %v967
        %v1008 = vadd.f32 %v887, %v969
        %v1009 = vadd.f32 %v888, %v971
        %v1010 = vadd.f32 %v889, %v973
        %v1011 = vadd.f32 %v890, %v975
        %v1012 = vadd.f32 %v891, %v977
        %v1013 = vadd.f32 %v892, %v979
        %v1014 = vadd.f32 %v893, %v981
        %v1015 = vadd.f32 %v894, %v983
        %v1016 = vadd.f32 %v895, %v985
        %v1017 = vadd.f32 %v896, %v987
        %v1018 = vadd.f32 %v897, %v989
        %v1019 = vadd.f32 %v898, %v991
        %v1020 = vadd.f32 %v899, %v993
        %v1021 = vadd.f32 %v900, %v995
        %v1022 = vadd.f32 %v901, %v997
        %v1023 = vadd.f32 %v902, %v999
        %v1024 = vrot.slane %v686, 3
        %v1025 = vrot.slane %v689, 3
        %v1026 = vrot.slane %v694, 3
        %v1027 = vrot.slane %v697, 3
        %v1028 = vrot.slane %v702, 3
        %v1029 = vrot.slane %v705, 3
        %v1030 = vrot.slane %v710, 3
        %v1031 = vrot.slane %v713, 3
        %v1032 = vrot.slane %v718, 3
        %v1033 = vrot.slane %v721, 3
        %v1034 = vrot.slane %v726, 3
        %v1035 = vrot.slane %v729, 3
        %v1036 = vrot.slane %v734, 3
        %v1037 = vrot.slane %v737, 3
        %v1038 = vrot.slane %v742, 3
        %v1039 = vrot.slane %v745, 3
        %v1040 = vrot.slane %v750, 3
        %v1041 = vrot.slane %v753, 3
        %v1042 = vrot.slane %v758, 3
        %v1043 = vrot.slane %v761, 3
        %v1044 = vrot.slane %v766, 3
        %v1045 = vrot.slane %v769, 3
        %v1046 = vrot.slane %v774, 3
        %v1047 = vrot.slane %v777, 3
        %vm1048 = vcmp.lt.s32.totalorder %v805, 5
        %v1049 = vsel %vm1048, %v1046, %v1047
        %v1050 = vsel %vm1048, %v1045, %v1046
        %v1051 = vsel %vm1048, %v1044, %v1045
        %v1052 = vsel %vm1048, %v1043, %v1044
        %v1053 = vsel %vm1048, %v1042, %v1043
        %v1054 = vsel %vm1048, %v1041, %v1042
        %v1055 = vsel %vm1048, %v1040, %v1041
        %v1056 = vsel %vm1048, %v1039, %v1040
        %v1057 = vsel %vm1048, %v1038, %v1039
        %v1058 = vsel %vm1048, %v1037, %v1038
        %v1059 = vsel %vm1048, %v1036, %v1037
        %v1060 = vsel %vm1048, %v1035, %v1036
        %v1061 = vsel %vm1048, %v1034, %v1035
        %v1062 = vsel %vm1048, %v1033, %v1034
        %v1063 = vsel %vm1048, %v1032, %v1033
        %v1064 = vsel %vm1048, %v1031, %v1032
        %v1065 = vsel %vm1048, %v1030, %v1031
        %v1066 = vsel %vm1048, %v1029, %v1030
        %v1067 = vsel %vm1048, %v1028, %v1029
        %v1068 = vsel %vm1048, %v1027, %v1028
        %v1069 = vsel %vm1048, %v1026, %v1027
        %v1070 = vsel %vm1048, %v1025, %v1026
        %v1071 = vsel %vm1048, %v1024, %v1025
        %v1072 = vsel %vm1048, %v1047, %v1024
        %1073 = vrot.lane.b32.xlu0 %v1071, 32
        %v1074 = vpop.permute.xlu0 %1073
        %1075 = vrot.lane.b32.xlu0 %v1070, 32
        %v1076 = vpop.permute.xlu0 %1075
        %1077 = vrot.lane.b32.xlu0 %v1069, 32
        %v1078 = vpop.permute.xlu0 %1077
        %1079 = vrot.lane.b32.xlu0 %v1068, 32
        %v1080 = vpop.permute.xlu0 %1079
        %1081 = vrot.lane.b32.xlu0 %v1067, 32
        %v1082 = vpop.permute.xlu0 %1081
        %1083 = vrot.lane.b32.xlu0 %v1066, 32
        %v1084 = vpop.permute.xlu0 %1083
        %1085 = vrot.lane.b32.xlu0 %v1065, 32
        %v1086 = vpop.permute.xlu0 %1085
        %1087 = vrot.lane.b32.xlu0 %v1064, 32
        %v1088 = vpop.permute.xlu0 %1087
        %1089 = vrot.lane.b32.xlu0 %v1063, 32
        %v1090 = vpop.permute.xlu0 %1089
        %1091 = vrot.lane.b32.xlu0 %v1062, 32
        %v1092 = vpop.permute.xlu0 %1091
        %1093 = vrot.lane.b32.xlu0 %v1061, 32
        %v1094 = vpop.permute.xlu0 %1093
        %1095 = vrot.lane.b32.xlu0 %v1060, 32
        %v1096 = vpop.permute.xlu0 %1095
        %1097 = vrot.lane.b32.xlu0 %v1059, 32
        %v1098 = vpop.permute.xlu0 %1097
        %1099 = vrot.lane.b32.xlu0 %v1058, 32
        %v1100 = vpop.permute.xlu0 %1099
        %1101 = vrot.lane.b32.xlu0 %v1057, 32
        %v1102 = vpop.permute.xlu0 %1101
        %1103 = vrot.lane.b32.xlu0 %v1056, 32
        %v1104 = vpop.permute.xlu0 %1103
        %1105 = vrot.lane.b32.xlu0 %v1055, 32
        %v1106 = vpop.permute.xlu0 %1105
        %1107 = vrot.lane.b32.xlu0 %v1054, 32
        %v1108 = vpop.permute.xlu0 %1107
        %1109 = vrot.lane.b32.xlu0 %v1053, 32
        %v1110 = vpop.permute.xlu0 %1109
        %1111 = vrot.lane.b32.xlu0 %v1052, 32
        %v1112 = vpop.permute.xlu0 %1111
        %1113 = vrot.lane.b32.xlu0 %v1051, 32
        %v1114 = vpop.permute.xlu0 %1113
        %1115 = vrot.lane.b32.xlu0 %v1050, 32
        %v1116 = vpop.permute.xlu0 %1115
        %1117 = vrot.lane.b32.xlu0 %v1049, 32
        %v1118 = vpop.permute.xlu0 %1117
        %1119 = vrot.lane.b32.xlu0 %v1072, 32
        %v1120 = vpop.permute.xlu0 %1119
        %v1121 = vadd.f32 %v1000, %v1074
        %v1122 = vadd.f32 %v1001, %v1076
        %v1123 = vadd.f32 %v1002, %v1078
        %v1124 = vadd.f32 %v1003, %v1080
        %v1125 = vadd.f32 %v1004, %v1082
        %v1126 = vadd.f32 %v1005, %v1084
        %v1127 = vadd.f32 %v1006, %v1086
        %v1128 = vadd.f32 %v1007, %v1088
        %v1129 = vadd.f32 %v1008, %v1090
        %v1130 = vadd.f32 %v1009, %v1092
        %v1131 = vadd.f32 %v1010, %v1094
        %v1132 = vadd.f32 %v1011, %v1096
        %v1133 = vadd.f32 %v1012, %v1098
        %v1134 = vadd.f32 %v1013, %v1100
        %v1135 = vadd.f32 %v1014, %v1102
        %v1136 = vadd.f32 %v1015, %v1104
        %v1137 = vadd.f32 %v1016, %v1106
        %v1138 = vadd.f32 %v1017, %v1108
        %v1139 = vadd.f32 %v1018, %v1110
        %v1140 = vadd.f32 %v1019, %v1112
        %v1141 = vadd.f32 %v1020, %v1114
        %v1142 = vadd.f32 %v1021, %v1116
        %v1143 = vadd.f32 %v1022, %v1118
        %v1144 = vadd.f32 %v1023, %v1120
        %v1145 = vld [vmem:[#allocation7] sm:$0xff]
        %v1146 = vld [vmem:[#allocation7 + $0x8] sm:$0xff]
        %v1147 = vld [vmem:[#allocation7 + $0x10] sm:$0xff]
        %v1148 = vadd.f32 %v1121, %v1145
        %v1149 = vadd.f32 %v1122, %v1146
        %v1150 = vadd.f32 %v1123, %v1147
        %v1151 = vadd.f32 %v1124, %v1145
        %v1152 = vadd.f32 %v1125, %v1146
        %v1153 = vadd.f32 %v1126, %v1147
        %v1154 = vadd.f32 %v1127, %v1145
        %v1155 = vadd.f32 %v1128, %v1146
        %v1156 = vadd.f32 %v1129, %v1147
        %v1157 = vadd.f32 %v1130, %v1145
        %v1158 = vadd.f32 %v1131, %v1146
        %v1159 = vadd.f32 %v1132, %v1147
        %v1160 = vadd.f32 %v1133, %v1145
        %v1161 = vadd.f32 %v1134, %v1146
        %v1162 = vadd.f32 %v1135, %v1147
        %v1163 = vadd.f32 %v1136, %v1145
        %v1164 = vadd.f32 %v1137, %v1146
        %v1165 = vadd.f32 %v1138, %v1147
        %v1166 = vadd.f32 %v1139, %v1145
        %v1167 = vadd.f32 %v1140, %v1146
        %v1168 = vadd.f32 %v1141, %v1147
        %v1169 = vadd.f32 %v1142, %v1145
        %v1170 = vadd.f32 %v1143, %v1146
        %v1171 = vadd.f32 %v1144, %v1147
        %v1172 = vmax.f32 %v1148, %v1149
        %v1173 = vmax.f32 %v1172, %v1150
        %v1174 = vrot.slane %v1173, 4
        %v1175 = vmax.f32 %v1173, %v1174
        %v1176 = vrot.slane %v1175, 2
        %v1177 = vmax.f32 %v1175, %v1176
        %v1178 = vrot.slane %v1177, 1
        %v1179 = vmax.f32 %v1177, %v1178
        %v1180 = vmax.f32 %v1151, %v1152
        %v1181 = vmax.f32 %v1180, %v1153
        %v1182 = vrot.slane %v1181, 4
        %v1183 = vmax.f32 %v1181, %v1182
        %v1184 = vrot.slane %v1183, 2
        %v1185 = vmax.f32 %v1183, %v1184
        %v1186 = vrot.slane %v1185, 1
        %v1187 = vmax.f32 %v1185, %v1186
        %v1188 = vmax.f32 %v1154, %v1155
        %v1189 = vmax.f32 %v1188, %v1156
        %v1190 = vrot.slane %v1189, 4
        %v1191 = vmax.f32 %v1189, %v1190
        %v1192 = vrot.slane %v1191, 2
        %v1193 = vmax.f32 %v1191, %v1192
        %v1194 = vrot.slane %v1193, 1
        %v1195 = vmax.f32 %v1193, %v1194
        %v1196 = vmax.f32 %v1157, %v1158
        %v1197 = vmax.f32 %v1196, %v1159
        %v1198 = vrot.slane %v1197, 4
        %v1199 = vmax.f32 %v1197, %v1198
        %v1200 = vrot.slane %v1199, 2
        %v1201 = vmax.f32 %v1199, %v1200
        %v1202 = vrot.slane %v1201, 1
        %v1203 = vmax.f32 %v1201, %v1202
        %v1204 = vmax.f32 %v1160, %v1161
        %v1205 = vmax.f32 %v1204, %v1162
        %v1206 = vrot.slane %v1205, 4
        %v1207 = vmax.f32 %v1205, %v1206
        %v1208 = vrot.slane %v1207, 2
        %v1209 = vmax.f32 %v1207, %v1208
        %v1210 = vrot.slane %v1209, 1
        %v1211 = vmax.f32 %v1209, %v1210
        %v1212 = vmax.f32 %v1163, %v1164
        %v1213 = vmax.f32 %v1212, %v1165
        %v1214 = vrot.slane %v1213, 4
        %v1215 = vmax.f32 %v1213, %v1214
        %v1216 = vrot.slane %v1215, 2
        %v1217 = vmax.f32 %v1215, %v1216
        %v1218 = vrot.slane %v1217, 1
        %v1219 = vmax.f32 %v1217, %v1218
        %v1220 = vmax.f32 %v1166, %v1167
        %v1221 = vmax.f32 %v1220, %v1168
        %v1222 = vrot.slane %v1221, 4
        %v1223 = vmax.f32 %v1221, %v1222
        %v1224 = vrot.slane %v1223, 2
        %v1225 = vmax.f32 %v1223, %v1224
        %v1226 = vrot.slane %v1225, 1
        %v1227 = vmax.f32 %v1225, %v1226
        %v1228 = vmax.f32 %v1169, %v1170
        %v1229 = vmax.f32 %v1228, %v1171
        %v1230 = vrot.slane %v1229, 4
        %v1231 = vmax.f32 %v1229, %v1230
        %v1232 = vrot.slane %v1231, 2
        %v1233 = vmax.f32 %v1231, %v1232
        %v1234 = vrot.slane %v1233, 1
        %v1235 = vmax.f32 %v1233, %v1234
        %v1236 = vld [vmem:[%s3] sm:$0x1]
        %v1238 = vlaneseq
        %v1239 = vshrl.u32 %v1238, 7
        %v1240 = vsub.s32 0, %v1239
        %v1241 = vrot.slane %v1236, %v1240
        %v1243 = vadd.f32 %v1179, %v1241
        %v1244 = vadd.f32 %v1187, %v1241
        %v1245 = vadd.f32 %v1195, %v1241
        %v1246 = vadd.f32 %v1203, %v1241
        %v1247 = vadd.f32 %v1211, %v1241
        %v1248 = vadd.f32 %v1219, %v1241
        %v1249 = vadd.f32 %v1227, %v1241
        %v1250 = vadd.f32 %v1235, %v1241
        %v1251 = vld [vmem:[#allocation8] sm:$0xff]
        %v1252 = vld [vmem:[#allocation8 + $0x8] sm:$0xff]
        %v1253 = vld [vmem:[#allocation8 + $0x10] sm:$0xff]
        %v1254 = vld [vmem:[#allocation8 + $0x18] sm:$0xff]
        %v1255 = vld [vmem:[#allocation8 + $0x20] sm:$0xff]
        %v1256 = vld [vmem:[#allocation8 + $0x28] sm:$0xff]
        %v1257 = vld [vmem:[#allocation8 + $0x30] sm:$0xff]
        %v1258 = vld [vmem:[#allocation8 + $0x38] sm:$0xff]
        %v1259 = vld [vmem:[#allocation8 + $0x40] sm:$0xff]
        %v1260 = vld [vmem:[#allocation8 + $0x48] sm:$0xff]
        %v1261 = vld [vmem:[#allocation8 + $0x50] sm:$0xff]
        %v1262 = vld [vmem:[#allocation8 + $0x58] sm:$0xff]
        %v1263 = vld [vmem:[#allocation8 + $0x60] sm:$0xff]
        %v1264 = vld [vmem:[#allocation8 + $0x68] sm:$0xff]
        %v1265 = vld [vmem:[#allocation8 + $0x70] sm:$0xff]
        %v1266 = vld [vmem:[#allocation8 + $0x78] sm:$0xff]
        %v1267 = vld [vmem:[%s5] sm:$0x1]
        %v1269 = vlaneseq
        %v1270 = vshrl.u32 %v1269, 7
        %v1271 = vsub.s32 0, %v1270
        %v1272 = vrot.slane %v1267, %v1271
        %v1282 = vrot.slane %v1244, 7
        %vm1283 = vcmask 1041409
        %v1284 = vsel %vm1283, %v1282, %v1243
        %v1285 = vrot.slane %v1245, 6
        %vm1286 = vcmask 1042434
        %v1287 = vsel %vm1286, %v1285, %v1284
        %v1288 = vrot.slane %v1246, 5
        %vm1289 = vcmask 1043459
        %v1290 = vsel %vm1289, %v1288, %v1287
        %v1291 = vrot.slane %v1247, 4
        %vm1292 = vcmask 1044484
        %v1293 = vsel %vm1292, %v1291, %v1290
        %v1294 = vrot.slane %v1248, 3
        %vm1295 = vcmask 1045509
        %v1296 = vsel %vm1295, %v1294, %v1293
        %v1297 = vrot.slane %v1249, 2
        %vm1298 = vcmask 1046534
        %v1299 = vsel %vm1298, %v1297, %v1296
        %v1300 = vrot.slane %v1250, 1
        %vm1301 = vcmask 1047559
        %v1302 = vsel %vm1301, %v1300, %v1299
        %1304 = vmatprep.subr.mxu0 0.0
        %1305 = vmatpush1.msra.mxu0 %v1251
        %1306 = vmatprep.subr.mxu0 0.0
        %1307 = vmatpush1.msra.mxu0 %v1252
        %1308 = vmatprep.subr.mxu0 0.0
        %1309 = vmatpush1.msra.mxu0 %v1253
        %1310 = vmatprep.subr.mxu0 0.0
        %1311 = vmatpush1.msra.mxu0 %v1254
        %1312 = vmatprep.subr.mxu0 0.0
        %1313 = vmatpush1.msra.mxu0 %v1255
        %1314 = vmatprep.subr.mxu0 0.0
        %1315 = vmatpush1.msra.mxu0 %v1256
        %1316 = vmatprep.subr.mxu0 0.0
        %1317 = vmatpush1.msra.mxu0 %v1257
        %1318 = vmatprep.subr.mxu0 0.0
        %1319 = vmatpush1.msra.mxu0 %v1258
        %1320 = vmatprep.subr.mxu0 0.0
        %1321 = vmatpush1.msra.mxu0 %v1259
        %1322 = vmatprep.subr.mxu0 0.0
        %1323 = vmatpush1.msra.mxu0 %v1260
        %1324 = vmatprep.subr.mxu0 0.0
        %1325 = vmatpush1.msra.mxu0 %v1261
        %1326 = vmatprep.subr.mxu0 0.0
        %1327 = vmatpush1.msra.mxu0 %v1262
        %1328 = vmatprep.subr.mxu0 0.0
        %1329 = vmatpush1.msra.mxu0 %v1263
        %1330 = vmatprep.subr.mxu0 0.0
        %1331 = vmatpush1.msra.mxu0 %v1264
        %1332 = vmatprep.subr.mxu0 0.0
        %1333 = vmatpush1.msra.mxu0 %v1265
        %1334 = vmatprep.subr.mxu0 0.0
        %1335 = vmatpush1.msra.mxu0 %v1266
        %1336 = vmatprep.subr.mxu0 0.0
        %1337 = vmatpush1.msra.mxu0 0.0
        %1338 = vmatprep.subr.mxu0 0.0
        %1339 = vmatpush1.msra.mxu0 0.0
        %1340 = vmatprep.subr.mxu0 0.0
        %1341 = vmatpush1.msra.mxu0 0.0
        %1342 = vmatprep.subr.mxu0 0.0
        %1343 = vmatpush1.msra.mxu0 0.0
        %1344 = vmatprep.subr.mxu0 0.0
        %1345 = vmatpush1.msra.mxu0 0.0
        %1346 = vmatprep.subr.mxu0 0.0
        %1347 = vmatpush1.msra.mxu0 0.0
        %1348 = vmatprep.subr.mxu0 0.0
        %1349 = vmatpush1.msra.mxu0 0.0
        %1350 = vmatprep.subr.mxu0 0.0
        %1351 = vmatpush1.msra.mxu0 0.0
        %1352 = vmatprep.subr.mxu0 0.0
        %1353 = vmatpush1.msra.mxu0 0.0
        %1354 = vmatprep.subr.mxu0 0.0
        %1355 = vmatpush1.msra.mxu0 0.0
        %1356 = vmatprep.subr.mxu0 0.0
        %1357 = vmatpush1.msra.mxu0 0.0
        %1358 = vmatprep.subr.mxu0 0.0
        %1359 = vmatpush1.msra.mxu0 0.0
        %1360 = vmatprep.subr.mxu0 0.0
        %1361 = vmatpush1.msra.mxu0 0.0
        %1362 = vmatprep.subr.mxu0 0.0
        %1363 = vmatpush1.msra.mxu0 0.0
        %1364 = vmatprep.subr.mxu0 0.0
        %1365 = vmatpush1.msra.mxu0 0.0
        %1366 = vmatprep.subr.mxu0 0.0
        %1367 = vmatpush1.msra.mxu0 0.0
        %1368 = vmatprep.mubr.f32.mxu0 0.0
        %1369 = vmatmul.mubr.f32.gmra.mrb[0].mxu0 %v1302
        %v1370 = vpop.f32.mrb[0].mxu0
        %v1371 = vadd.f32 %v1272, %v1370
        %v1372 = vpop.f32.mrb[0].mxu0
        %1373 = vdwg.mxu0
        %1374 = vmax.xlane.f32.xlu0 %v1371
        %v1375 = vpop.xlane.xlu0 %1374
        %v1376 = vsub.f32 %v1371, %v1375
        %v1377 = vmul.f32 %v1376, 1.442695
        %v1378 = vpow.pop %v1377
        %1379 = vadd.xlane.f32.xlu0 %v1378
        %v1380 = vpop.xlane.xlu0 %1379
        %v1381 = vrcp.pop %v1380
        %v1382 = vmul.f32 %v1378, %v1381
        %1383 = vst [vmem:[%s310] sm:$0xff] %v1382
        %s1384 = sand.u32 %s164, 1
        %s1385 = scalar_lea.sflag [#allocation4], %s1384
        %s1386 = sand.u32 %s164, 1
        %s1387 = smul.addr %s1386, 8
        %s1388 = scalar_lea.vmem [#allocation10], %s1387
        // Predicated region
        $region61: #{tpu_custom_call.1} parent=43 // pred_check
          %p1389 = pneg %p174
        $region62: #{tpu_custom_call.1} parent=43 // pred_check_branch
          %1391 = sbr.rel (%p1389) target = $region64
        $region63: #{tpu_custom_call.1} parent=43 // pred_region
          %s1393 = ssub.s32 128, 128
          %1394 = vsyncadd %s1385, %s1393
          %s1395 = smul.addr %s25, 128
          %s1396 = scalar_lea.hbm %s6, %s1395
          %s1398 = sshll.u32 %s1388, 4
          %s1399 = int_to_ptr.vmem [resolvable:$true] %s1398
          %1401 = dma.vmem_to_hbm [thread:$0]  %s1399, 128, %s1396, %s1385
        $region64: #{tpu_custom_call.1} parent=43 // pred_fallthru
          _
      $region44: #{tpu_custom_call.1} parent=5 // pred_fallthru
        _
      %p1402 = scmp.le.s32.totalorder 2, %s20
      // Predicated region
      $region65: #{tpu_custom_call.1} parent=5 // pred_check
        %p1403 = pneg %p1402
      $region66: #{tpu_custom_call.1} parent=5 // pred_check_branch
        %1405 = sbr.rel (%p1403) target = $region68
      $region67: #{tpu_custom_call.1} parent=5 // pred_region
        %s1406 = ssub.s32 %s20, 2
        // Predicated region
        $region69: #{tpu_custom_call.1} parent=67 // pred_check
          %p1407 = pneg %p180
        $region70: #{tpu_custom_call.1} parent=67 // pred_check_branch
          %1409 = sbr.rel (%p1407) target = $region72
        $region71: #{tpu_custom_call.1} parent=67 // pred_region
          %s1410 = sand.u32 %s165, 1
          %s1411 = scalar_lea.sflag [#allocation4], %s1410
          %s1412 = sand.u32 %s165, 1
          %s1413 = smul.addr %s1412, 8
          %s1414 = scalar_lea.vmem [#allocation10], %s1413
          %1415 = dma.done %s1411, 128
        $region72: #{tpu_custom_call.1} parent=67 // pred_fallthru
          _
      $region68: #{tpu_custom_call.1} parent=5 // pred_fallthru
        _
    $region6: #{tpu_custom_call.1} parent=1 // loop_footer
      %s24 = sadd.s32 1, %s20
    $region7: #{tpu_custom_call.1} parent=1 // loop_footer_branch
      %19 = sbr.rel target = $region3
    $region8: #{tpu_custom_call.1} parent=1 // loop_exit
      _
    %1416 = vsyncpa [#allocation3], 1
    %s1417 = scalar_lea.sflag [#allocation3], 1
    %1418 = vsyncpa %s1417, 1
    %1419 = vsyncpa [#allocation6], 1
    %1420 = vsyncpa [#allocation9], 1
    %1421 = vsyncpa [#allocation4], 1
    %s1422 = scalar_lea.sflag [#allocation4], 1
    %1423 = vsyncpa %s1422, 1

</llo_original>
